<compile_context>
chip_gen: v5e
topology: v5e:2x2
jax: 0.10.0
libtpu: 0.0.40
codegen_flags: <defaults>
</compile_context>

<pallas_src>
import jax
import jax.numpy as jnp
from jax.experimental import pallas as pl
from jax.experimental.pallas import tpu as pltpu

IN_DIM = 64      # MLP(in_dim=64, ...)
DIM = 256        # hidden dim
OUT_DIM = 4096   # out_dim
# n_blk = 3 -> exactly three Linear layers (first, one middle, last).

TM_MAX = 512                      # per-step LHS rows; sized for v7x's VMEM
_SUBLANE = 16                     # bf16 sublane packing for the x tile
_VMEM_LIMIT = 32 * 1024 * 1024    # lifts v5e's 16 MiB default scoped limit


def _round_up(n, m):
    return ((n + m - 1) // m) * m


# ---------------------------------------------------------------------------
# Fused MLP kernel: 3 MXU matmuls + bias + ReLU, everything stays in VMEM.
# ---------------------------------------------------------------------------
def _mlp_kernel(x_ref, w1_ref, b1_ref, w2_ref, b2_ref, w3_ref, b3_ref, o_ref):
    # LinearBlock 1: Linear(IN_DIM, DIM) + ReLU   (x already bf16)
    h = jnp.dot(x_ref[...], w1_ref[...],
                preferred_element_type=jnp.float32) + b1_ref[...]
    h = jnp.maximum(h, 0.0)
    # LinearBlock 2: Linear(DIM, DIM) + ReLU
    h = jnp.dot(h.astype(jnp.bfloat16), w2_ref[...],
                preferred_element_type=jnp.float32) + b2_ref[...]
    h = jnp.maximum(h, 0.0)
    # LinearBlock 3: Linear(DIM, OUT_DIM), activation='none', norm='none'
    o_ref[...] = (jnp.dot(h.astype(jnp.bfloat16), w3_ref[...],
                          preferred_element_type=jnp.float32)
                  + b3_ref[...]).astype(o_ref.dtype)


def mlp_forward(params, x, out_dtype=jnp.float32):
    """Equivalent of MLP.forward: flatten to (B, in_dim), run 3 linear blocks."""
    B = x.shape[0]
    xf = x.reshape(B, -1)                       # x.view(x.size(0), -1)
    assert xf.shape[1] == IN_DIM, (xf.shape[1], IN_DIM)
    xf = xf.astype(jnp.bfloat16)                # bf16 MXU operand, half the DMA

    # Batch tiling: spread B evenly over the fewest steps, tile rows a
    # multiple of 16 (bf16 sublane packing), capped at TM_MAX.
    m_steps = pl.cdiv(B, TM_MAX)
    tm = _round_up(pl.cdiv(B, m_steps), _SUBLANE)
    b_pad = m_steps * tm
    if b_pad != B:
        xf = jnp.pad(xf, ((0, b_pad - B), (0, 0)))

    # Guarantee >= 2 grid steps so dimension_semantics=("parallel","parallel")
    # can shard across v7x's two TensorCores: if the batch grid alone is one
    # step, split OUT_DIM into two 2048-wide halves instead.
    nsplit = 1 if m_steps >= 2 else 2
    tn = OUT_DIM // nsplit

    out = pl.pallas_call(
        _mlp_kernel,
        grid=(m_steps, nsplit),
        out_shape=jax.ShapeDtypeStruct((b_pad, OUT_DIM), out_dtype),
        in_specs=[
            pl.BlockSpec((tm, IN_DIM), lambda i, j: (i, 0)),   # x tile (bf16)
            pl.BlockSpec((IN_DIM, DIM), lambda i, j: (0, 0)),  # w1 (bf16)
            pl.BlockSpec((1, DIM), lambda i, j: (0, 0)),       # b1 (f32)
            pl.BlockSpec((DIM, DIM), lambda i, j: (0, 0)),     # w2 (bf16)
            pl.BlockSpec((1, DIM), lambda i, j: (0, 0)),       # b2 (f32)
            pl.BlockSpec((DIM, tn), lambda i, j: (0, j)),      # w3 (bf16), N-split
            pl.BlockSpec((1, tn), lambda i, j: (0, j)),        # b3 (f32), N-split
        ],
        out_specs=pl.BlockSpec((tm, tn), lambda i, j: (i, j)),
        compiler_params=pltpu.CompilerParams(
            dimension_semantics=("parallel", "parallel"),
            vmem_limit_bytes=_VMEM_LIMIT),
    )(xf,
      params['w1'], params['b1'].reshape(1, DIM),
      params['w2'], params['b2'].reshape(1, DIM),
      params['w3'], params['b3'].reshape(1, OUT_DIM))
    return out[:B]


# ---------------------------------------------------------------------------
# Parameter init (deterministic).  Weights stored in bf16 once (MXU operands),
# biases in f32 (added after f32 accumulation).
# ---------------------------------------------------------------------------
def init_params(key):
    k1, k2, k3 = jax.random.split(key, 3)

    def nrm(k, shape, scale=0.1):
        return (scale * jax.random.normal(k, shape, dtype=jnp.float32)
                ).astype(jnp.bfloat16)

    return {
        'w1': nrm(k1, (IN_DIM, DIM)),   'b1': jnp.zeros((DIM,), jnp.float32),
        'w2': nrm(k2, (DIM, DIM)),      'b2': jnp.zeros((DIM,), jnp.float32),
        'w3': nrm(k3, (DIM, OUT_DIM)),  'b3': jnp.zeros((OUT_DIM,), jnp.float32),
    }


def mlp_reference(params, x):
    """Plain-JAX reference with the same bf16-operand / f32-accumulate math."""
    h = x.reshape(x.shape[0], -1).astype(jnp.bfloat16)
    h = jnp.dot(h, params['w1'],
                preferred_element_type=jnp.float32) + params['b1']
    h = jnp.maximum(h, 0.0)
    h = jnp.dot(h.astype(jnp.bfloat16), params['w2'],
                preferred_element_type=jnp.float32) + params['b2']
    h = jnp.maximum(h, 0.0)
    return jnp.dot(h.astype(jnp.bfloat16), params['w3'],
                   preferred_element_type=jnp.float32) + params['b3']


if __name__ == "__main__":
    key = jax.random.PRNGKey(0)
    k_param, k_x = jax.random.split(key)
    params = init_params(k_param)

    B = 2
    # Any trailing shape that flattens to in_dim=64 (MLP.forward does .view(B, -1)).
    x = jax.random.normal(k_x, (B, 4, 4, 4), dtype=jnp.float32)

    fwd = jax.jit(mlp_forward)
    out = fwd(params, x)
    jax.block_until_ready(out)

    assert out.shape == (B, OUT_DIM), out.shape
    assert out.dtype == jnp.float32, out.dtype
    assert bool(jnp.all(jnp.isfinite(out)))

    ref = mlp_reference(params, x)
    assert bool(jnp.allclose(out, ref, rtol=5e-2, atol=5e-2)), \
        float(jnp.max(jnp.abs(out - ref)))

    print("KERNEL_OK")
</pallas_src>

<mosaic_0001>
module attributes {stable_mosaic.version = 11 : i64} {
  func.func @_mlp_kernel(%arg0: i32, %arg1: i32, %arg2: memref<16x64xbf16, #tpu.memory_space<vmem>>, %arg3: memref<64x256xbf16, #tpu.memory_space<vmem>>, %arg4: memref<1x256xf32, #tpu.memory_space<vmem>>, %arg5: memref<256x256xbf16, #tpu.memory_space<vmem>>, %arg6: memref<1x256xf32, #tpu.memory_space<vmem>>, %arg7: memref<256x2048xbf16, #tpu.memory_space<vmem>>, %arg8: memref<1x2048xf32, #tpu.memory_space<vmem>>, %arg9: memref<16x2048xf32, #tpu.memory_space<vmem>>) attributes {dimension_semantics = [#tpu.dimension_semantics<parallel>, #tpu.dimension_semantics<parallel>], iteration_bounds = array<i64: 1, 2>, scalar_prefetch = 0 : i64, scratch_operands = 0 : i64, tpu.core_type = #tpu.core_type<tc>, window_params = [{transform_indices = @transform_0, window_bounds = array<i64: 16, 64>}, {pipeline_mode = #tpu.pipeline_mode<synchronous>, transform_indices = @transform_1, window_bounds = array<i64: 64, 256>}, {pipeline_mode = #tpu.pipeline_mode<synchronous>, transform_indices = @transform_2, window_bounds = array<i64: 1, 256>}, {pipeline_mode = #tpu.pipeline_mode<synchronous>, transform_indices = @transform_3, window_bounds = array<i64: 256, 256>}, {pipeline_mode = #tpu.pipeline_mode<synchronous>, transform_indices = @transform_4, window_bounds = array<i64: 1, 256>}, {transform_indices = @transform_5, window_bounds = array<i64: 256, 2048>}, {transform_indices = @transform_6, window_bounds = array<i64: 1, 2048>}, {transform_indices = @transform_7, window_bounds = array<i64: 16, 2048>}]} {
    %c0 = arith.constant 0 : index
    %c0_0 = arith.constant 0 : index
    %0 = vector.load %arg2[%c0, %c0_0] : memref<16x64xbf16, #tpu.memory_space<vmem>>, vector<16x64xbf16>
    %c0_1 = arith.constant 0 : index
    %c0_2 = arith.constant 0 : index
    %1 = vector.load %arg3[%c0_1, %c0_2] : memref<64x256xbf16, #tpu.memory_space<vmem>>, vector<64x256xbf16>
    %cst = arith.constant dense<0.000000e+00> : vector<16x256xf32>
    %2 = tpu.matmul %0, %1, %cst {dimension_numbers = #tpu.dot_dimension_numbers<[1], [0], [0], [1], [0, 0, 1, 1], [], []>} : vector<16x64xbf16>, vector<64x256xbf16>, vector<16x256xf32> -> vector<16x256xf32>
    %c0_3 = arith.constant 0 : index
    %c0_4 = arith.constant 0 : index
    %3 = vector.load %arg4[%c0_3, %c0_4] : memref<1x256xf32, #tpu.memory_space<vmem>>, vector<1x256xf32>
    %4 = vector.broadcast %3 : vector<1x256xf32> to vector<16x256xf32>
    %5 = arith.addf %2, %4 : vector<16x256xf32>
    %cst_5 = arith.constant 0.000000e+00 : f32
    %6 = vector.broadcast %cst_5 : f32 to vector<16x256xf32>
    %7 = arith.maximumf %5, %6 : vector<16x256xf32>
    %8 = arith.truncf %7 : vector<16x256xf32> to vector<16x256xbf16>
    %c0_6 = arith.constant 0 : index
    %c0_7 = arith.constant 0 : index
    %9 = vector.load %arg5[%c0_6, %c0_7] : memref<256x256xbf16, #tpu.memory_space<vmem>>, vector<256x256xbf16>
    %cst_8 = arith.constant dense<0.000000e+00> : vector<16x256xf32>
    %10 = tpu.matmul %8, %9, %cst_8 {dimension_numbers = #tpu.dot_dimension_numbers<[1], [0], [0], [1], [0, 0, 1, 1], [], []>} : vector<16x256xbf16>, vector<256x256xbf16>, vector<16x256xf32> -> vector<16x256xf32>
    %c0_9 = arith.constant 0 : index
    %c0_10 = arith.constant 0 : index
    %11 = vector.load %arg6[%c0_9, %c0_10] : memref<1x256xf32, #tpu.memory_space<vmem>>, vector<1x256xf32>
    %12 = vector.broadcast %11 : vector<1x256xf32> to vector<16x256xf32>
    %13 = arith.addf %10, %12 : vector<16x256xf32>
    %cst_11 = arith.constant 0.000000e+00 : f32
    %14 = vector.broadcast %cst_11 : f32 to vector<16x256xf32>
    %15 = arith.maximumf %13, %14 : vector<16x256xf32>
    %16 = arith.truncf %15 : vector<16x256xf32> to vector<16x256xbf16>
    %c0_12 = arith.constant 0 : index
    %c0_13 = arith.constant 0 : index
    %17 = vector.load %arg7[%c0_12, %c0_13] : memref<256x2048xbf16, #tpu.memory_space<vmem>>, vector<256x2048xbf16>
    %cst_14 = arith.constant dense<0.000000e+00> : vector<16x2048xf32>
    %18 = tpu.matmul %16, %17, %cst_14 {dimension_numbers = #tpu.dot_dimension_numbers<[1], [0], [0], [1], [0, 0, 1, 1], [], []>} : vector<16x256xbf16>, vector<256x2048xbf16>, vector<16x2048xf32> -> vector<16x2048xf32>
    %c0_15 = arith.constant 0 : index
    %c0_16 = arith.constant 0 : index
    %19 = vector.load %arg8[%c0_15, %c0_16] : memref<1x2048xf32, #tpu.memory_space<vmem>>, vector<1x2048xf32>
    %20 = vector.broadcast %19 : vector<1x2048xf32> to vector<16x2048xf32>
    %21 = arith.addf %18, %20 : vector<16x2048xf32>
    %c0_17 = arith.constant 0 : index
    %c0_18 = arith.constant 0 : index
    %22 = vector.load %arg9[%c0_17, %c0_18] : memref<16x2048xf32, #tpu.memory_space<vmem>>, vector<16x2048xf32>
    tpu.vector_store %arg9[%c0_17, %c0_18], %21 {strides = array<i32>} : memref<16x2048xf32, #tpu.memory_space<vmem>>, vector<16x2048xf32>,
    return
  }
  func.func @transform_0(%arg0: i32, %arg1: i32) -> (i32, i32) {
    %c0_i32 = arith.constant 0 : i32
    %c0_i32_0 = arith.constant 0 : i32
    return %arg0, %c0_i32 : i32, i32
  }
  func.func @transform_1(%arg0: i32, %arg1: i32) -> (i32, i32) {
    %c0_i32 = arith.constant 0 : i32
    %c0_i32_0 = arith.constant 0 : i32
    %c0_i32_1 = arith.constant 0 : i32
    return %c0_i32, %c0_i32_0 : i32, i32
  }
  func.func @transform_2(%arg0: i32, %arg1: i32) -> (i32, i32) {
    %c0_i32 = arith.constant 0 : i32
    %c0_i32_0 = arith.constant 0 : i32
    %c0_i32_1 = arith.constant 0 : i32
    return %c0_i32, %c0_i32_0 : i32, i32
  }
  func.func @transform_3(%arg0: i32, %arg1: i32) -> (i32, i32) {
    %c0_i32 = arith.constant 0 : i32
    %c0_i32_0 = arith.constant 0 : i32
    %c0_i32_1 = arith.constant 0 : i32
    return %c0_i32, %c0_i32_0 : i32, i32
  }
  func.func @transform_4(%arg0: i32, %arg1: i32) -> (i32, i32) {
    %c0_i32 = arith.constant 0 : i32
    %c0_i32_0 = arith.constant 0 : i32
    %c0_i32_1 = arith.constant 0 : i32
    return %c0_i32, %c0_i32_0 : i32, i32
  }
  func.func @transform_5(%arg0: i32, %arg1: i32) -> (i32, i32) {
    %c0_i32 = arith.constant 0 : i32
    %c0_i32_0 = arith.constant 0 : i32
    return %c0_i32, %arg1 : i32, i32
  }
  func.func @transform_6(%arg0: i32, %arg1: i32) -> (i32, i32) {
    %c0_i32 = arith.constant 0 : i32
    %c0_i32_0 = arith.constant 0 : i32
    return %c0_i32, %arg1 : i32, i32
  }
  func.func @transform_7(%arg0: i32, %arg1: i32) -> (i32, i32) {
    %c0_i32 = arith.constant 0 : i32
    return %arg0, %arg1 : i32, i32
  }
}

</mosaic_0001>

<llo_original>
// kernel: mlp_forward.1
$region0: #{mlp_forward.1}
  #allocation0 [shape = 'u32[]', space=smem, size = 0x4, offset = 0x4, fixed_abs, tag = 'smem constant byte address 0x4 - core index']
  #allocation1 [shape = 'u32[72,128]{1,0:T(1,128)}', space=vmem, size = 0x9000, scoped, tag = 'internal scratch']
  %s0 = inlined_call_operand.vmem [shape: bf16[16,64], index: 0, kind: input, shape index: {}]
  %s1 = inlined_call_operand.hbm [shape: bf16[64,256], index: 1, kind: input, shape index: {}]
  %s2 = inlined_call_operand.hbm [shape: f32[1,256], index: 2, kind: input, shape index: {}]
  %s3 = inlined_call_operand.hbm [shape: bf16[256,256], index: 3, kind: input, shape index: {}]
  %s4 = inlined_call_operand.hbm [shape: f32[1,256], index: 4, kind: input, shape index: {}]
  %s5 = inlined_call_operand.hbm [shape: bf16[256,4096], index: 5, kind: input, shape index: {}]
  %s6 = inlined_call_operand.hbm [shape: f32[1,4096], index: 6, kind: input, shape index: {}]
  %s7 = inlined_call_operand.vmem [shape: f32[16,4096], index: 7, kind: output, shape index: {}]
  %s8 = sld [smem:[#allocation0]]
  $region104: #{mlp_forward.1} parent=0
    _
  %s10 = ssub.s32 1, %s8
  %s11 = scalar_select 0, %s10, %s8
  $region1: #{mlp_forward.1} parent=0
    #allocation2 [shape = 'u8[32768]{0}', space=vmem, size = 0x8000, scoped, tag = 'input window, operand 1, single buffered']
    #allocation3 [shape = 's32[2]{0}', space=sflag, size = 0x8, scoped, tag = 'scoped memory for mlp_forward.1']
    #allocation4 [shape = 'u8[1024]{0}', space=vmem, size = 0x400, scoped, tag = 'input window, operand 2, single buffered']
    #allocation5 [shape = 's32[1]{0}', space=sflag, size = 0x4, scoped, tag = 'scoped memory for mlp_forward.1']
    #allocation6 [shape = 'u8[131072]{0}', space=vmem, size = 0x20000, scoped, tag = 'input window, operand 3, single buffered']
    #allocation7 [shape = 'u8[1024]{0}', space=vmem, size = 0x400, scoped, tag = 'input window, operand 4, single buffered']
    #allocation8 [shape = 's32[1]{0}', space=sflag, size = 0x4, scoped, tag = 'scoped memory for mlp_forward.1']
    #allocation9 [shape = 'u8[2097152]{0}', space=vmem, size = 0x200000, scoped, tag = 'input window, operand 5']
    #allocation10 [shape = 'u8[16384]{0}', space=vmem, size = 0x4000, scoped, tag = 'input window, operand 6']
    #allocation11 [shape = 'u8[262144]{0}', space=vmem, size = 0x40000, scoped, tag = 'output window, operand 0']
    %12 = vsyncpa [#allocation3], 0
    %13 = vsyncpa [#allocation5], 0
    %14 = vsyncpa [#allocation8], 0
    loop: start=0, step=1, limit=4
    $region2: #{mlp_forward.1} parent=1 // loop_pre_header
      _
    $region3: #{mlp_forward.1} parent=1 // loop_header
      %s16 = sphi 0, %s20
      %p17 = scmp.ge.s32.totalorder %s16, 4
      %s23 = sphi 0, %s35
      %s24 = sphi 0, %s31
      %s25 = sphi 0, %s23
      %s26 = sphi 0, %s24
      %s27 = sphi 0, %s25
      %s28 = sphi 0, %s26
      %s38 = sphi 0, %s40
      %s41 = sphi 0, %s38
      %s42 = sphi 0, %s41
      %s58 = sphi 0, %s42
      %s62 = sphi 0, %s62
      %s64 = sphi 0, %s62
      %s65 = sphi 0, %s64
      %s79 = sphi 0, %s65
      %s83 = sphi 0, %s83
      %s85 = sphi 0, %s83
      %s86 = sphi 0, %s85
      %s100 = sphi 0, %s86
      %s104 = sphi 0, %s104
      %s106 = sphi 0, %s104
      %s107 = sphi 0, %s106
      %s121 = sphi 0, %s107
      %s125 = sphi 0, %s125
      %s127 = sphi 0, %s125
      %s128 = sphi 0, %s127
      %s142 = sphi 0, %s128
      %s148 = sphi 0, %s150
      %s151 = sphi 0, %s148
      %s152 = sphi 0, %s151
      %s168 = sphi 0, %s152
      %s174 = sphi 0, %s176
      %s177 = sphi 0, %s174
      %s178 = sphi 0, %s177
      %s194 = sphi 0, %s178
      %s202 = sphi 0, %s204
      %s205 = sphi 0, %s202
      %s206 = sphi 0, %s205
      %s222 = sphi 0, %s206
    $region4: #{mlp_forward.1} parent=1 // loop_header_branch
      %19 = sbr.rel (%p17) target = $region8
    $region5: #{mlp_forward.1} parent=1 // loop_body
      %s21 = ssub.s32 %s16, 1
      %s22 = ssub.s32 %s16, 2
      %s29 = sadd.s32 1, %s24
      %p30 = scmp.ge.s32.totalorder %s29, 2
      %s31 = scalar_select %p30, 0, %s29
      %s32 = sadd.s32 1, %s23
      %s33 = scalar_select %p30, %s32, %s23
      %p34 = scmp.ge.s32.totalorder %s33, 1
      %s35 = scalar_select %p34, 0, %s33
      %s36 = ssub.s32 %s23, %s35
      %p37 = scmp.eq.s32.totalorder %s36, 0
      %s39 = sadd.s32 %s38, 1
      %s40 = scalar_select %p37, %s38, %s39
      %p43 = pneg %p37
      %p44 = scmp.eq.s32.totalorder %s16, 1
      %p45 = por %p43, %p44
      %p46 = scmp.ne.s32.totalorder %s38, %s41
      %p47 = scmp.eq.s32.totalorder %s16, 0
      %p48 = por %p46, %p47
      %p49 = scmp.ne.s32.totalorder %s38, %s41
      %p50 = scmp.eq.s32.totalorder %s21, 1
      %p51 = por %p49, %p50
      %p52 = scmp.ne.s32.totalorder %s41, %s42
      %p53 = scmp.eq.s32.totalorder %s21, 0
      %p54 = por %p52, %p53
      %p55 = scmp.ne.s32.totalorder %s41, %s42
      %p56 = scmp.eq.s32.totalorder %s22, 1
      %p57 = por %p55, %p56
      %p59 = scmp.ne.s32.totalorder %s42, %s58
      %p60 = scmp.eq.s32.totalorder %s22, 0
      %p61 = por %p59, %p60
      %s63 = sadd.s32 %s62, 1
      %p66 = scmp.eq.s32.totalorder %s16, 1
      %p67 = scmp.ne.s32.totalorder %s62, %s64
      %p68 = scmp.eq.s32.totalorder %s16, 0
      %p69 = por %p67, %p68
      %p70 = scmp.ne.s32.totalorder %s62, %s64
      %p71 = scmp.eq.s32.totalorder %s21, 1
      %p72 = por %p70, %p71
      %p73 = scmp.ne.s32.totalorder %s64, %s65
      %p74 = scmp.eq.s32.totalorder %s21, 0
      %p75 = por %p73, %p74
      %p76 = scmp.ne.s32.totalorder %s64, %s65
      %p77 = scmp.eq.s32.totalorder %s22, 1
      %p78 = por %p76, %p77
      %p80 = scmp.ne.s32.totalorder %s65, %s79
      %p81 = scmp.eq.s32.totalorder %s22, 0
      %p82 = por %p80, %p81
      %s84 = sadd.s32 %s83, 1
      %p87 = scmp.eq.s32.totalorder %s16, 1
      %p88 = scmp.ne.s32.totalorder %s83, %s85
      %p89 = scmp.eq.s32.totalorder %s16, 0
      %p90 = por %p88, %p89
      %p91 = scmp.ne.s32.totalorder %s83, %s85
      %p92 = scmp.eq.s32.totalorder %s21, 1
      %p93 = por %p91, %p92
      %p94 = scmp.ne.s32.totalorder %s85, %s86
      %p95 = scmp.eq.s32.totalorder %s21, 0
      %p96 = por %p94, %p95
      %p97 = scmp.ne.s32.totalorder %s85, %s86
      %p98 = scmp.eq.s32.totalorder %s22, 1
      %p99 = por %p97, %p98
      %p101 = scmp.ne.s32.totalorder %s86, %s100
      %p102 = scmp.eq.s32.totalorder %s22, 0
      %p103 = por %p101, %p102
      %s105 = sadd.s32 %s104, 1
      %p108 = scmp.eq.s32.totalorder %s16, 1
      %p109 = scmp.ne.s32.totalorder %s104, %s106
      %p110 = scmp.eq.s32.totalorder %s16, 0
      %p111 = por %p109, %p110
      %p112 = scmp.ne.s32.totalorder %s104, %s106
      %p113 = scmp.eq.s32.totalorder %s21, 1
      %p114 = por %p112, %p113
      %p115 = scmp.ne.s32.totalorder %s106, %s107
      %p116 = scmp.eq.s32.totalorder %s21, 0
      %p117 = por %p115, %p116
      %p118 = scmp.ne.s32.totalorder %s106, %s107
      %p119 = scmp.eq.s32.totalorder %s22, 1
      %p120 = por %p118, %p119
      %p122 = scmp.ne.s32.totalorder %s107, %s121
      %p123 = scmp.eq.s32.totalorder %s22, 0
      %p124 = por %p122, %p123
      %s126 = sadd.s32 %s125, 1
      %p129 = scmp.eq.s32.totalorder %s16, 1
      %p130 = scmp.ne.s32.totalorder %s125, %s127
      %p131 = scmp.eq.s32.totalorder %s16, 0
      %p132 = por %p130, %p131
      %p133 = scmp.ne.s32.totalorder %s125, %s127
      %p134 = scmp.eq.s32.totalorder %s21, 1
      %p135 = por %p133, %p134
      %p136 = scmp.ne.s32.totalorder %s127, %s128
      %p137 = scmp.eq.s32.totalorder %s21, 0
      %p138 = por %p136, %p137
      %p139 = scmp.ne.s32.totalorder %s127, %s128
      %p140 = scmp.eq.s32.totalorder %s22, 1
      %p141 = por %p139, %p140
      %p143 = scmp.ne.s32.totalorder %s128, %s142
      %p144 = scmp.eq.s32.totalorder %s22, 0
      %p145 = por %p143, %p144
      %s146 = ssub.s32 %s24, %s31
      %p147 = scmp.eq.s32.totalorder %s146, 0
      %s149 = sadd.s32 %s148, 1
      %s150 = scalar_select %p147, %s148, %s149
      %p153 = pneg %p147
      %p154 = scmp.eq.s32.totalorder %s16, 1
      %p155 = por %p153, %p154
      %p156 = scmp.ne.s32.totalorder %s148, %s151
      %p157 = scmp.eq.s32.totalorder %s16, 0
      %p158 = por %p156, %p157
      %p159 = scmp.ne.s32.totalorder %s148, %s151
      %p160 = scmp.eq.s32.totalorder %s21, 1
      %p161 = por %p159, %p160
      %p162 = scmp.ne.s32.totalorder %s151, %s152
      %p163 = scmp.eq.s32.totalorder %s21, 0
      %p164 = por %p162, %p163
      %p165 = scmp.ne.s32.totalorder %s151, %s152
      %p166 = scmp.eq.s32.totalorder %s22, 1
      %p167 = por %p165, %p166
      %p169 = scmp.ne.s32.totalorder %s152, %s168
      %p170 = scmp.eq.s32.totalorder %s22, 0
      %p171 = por %p169, %p170
      %s172 = ssub.s32 %s24, %s31
      %p173 = scmp.eq.s32.totalorder %s172, 0
      %s175 = sadd.s32 %s174, 1
      %s176 = scalar_select %p173, %s174, %s175
      %p179 = pneg %p173
      %p180 = scmp.eq.s32.totalorder %s16, 1
      %p181 = por %p179, %p180
      %p182 = scmp.ne.s32.totalorder %s174, %s177
      %p183 = scmp.eq.s32.totalorder %s16, 0
      %p184 = por %p182, %p183
      %p185 = scmp.ne.s32.totalorder %s174, %s177
      %p186 = scmp.eq.s32.totalorder %s21, 1
      %p187 = por %p185, %p186
      %p188 = scmp.ne.s32.totalorder %s177, %s178
      %p189 = scmp.eq.s32.totalorder %s21, 0
      %p190 = por %p188, %p189
      %p191 = scmp.ne.s32.totalorder %s177, %s178
      %p192 = scmp.eq.s32.totalorder %s22, 1
      %p193 = por %p191, %p192
      %p195 = scmp.ne.s32.totalorder %s178, %s194
      %p196 = scmp.eq.s32.totalorder %s22, 0
      %p197 = por %p195, %p196
      %s198 = ssub.s32 %s23, %s35
      %s199 = ssub.s32 %s24, %s31
      %s200 = sor.u32 %s198, %s199
      %p201 = scmp.eq.s32.totalorder %s200, 0
      %s203 = sadd.s32 %s202, 1
      %s204 = scalar_select %p201, %s202, %s203
      %p207 = pneg %p201
      %p208 = scmp.eq.s32.totalorder %s16, 1
      %p209 = por %p207, %p208
      %p210 = scmp.ne.s32.totalorder %s202, %s205
      %p211 = scmp.eq.s32.totalorder %s16, 0
      %p212 = por %p210, %p211
      %p213 = scmp.ne.s32.totalorder %s202, %s205
      %p214 = scmp.eq.s32.totalorder %s21, 1
      %p215 = por %p213, %p214
      %p216 = scmp.ne.s32.totalorder %s205, %s206
      %p217 = scmp.eq.s32.totalorder %s21, 0
      %p218 = por %p216, %p217
      %p219 = scmp.ne.s32.totalorder %s205, %s206
      %p220 = scmp.eq.s32.totalorder %s22, 1
      %p221 = por %p219, %p220
      %p223 = scmp.ne.s32.totalorder %s206, %s222
      %p224 = scmp.eq.s32.totalorder %s22, 0
      %p225 = por %p223, %p224
      %p226 = scmp.le.s32.totalorder 1, %s16
      %p227 = scmp.lt.s32.totalorder %s16, 3
      %p228 = pnand %p226, %p227
      %p229 = pneg %p228
      // Predicated region
      $region9: #{mlp_forward.1} parent=5 // pred_check
        _
      $region10: #{mlp_forward.1} parent=5 // pred_check_branch
        %231 = sbr.rel (%p228) target = $region12
      $region11: #{mlp_forward.1} parent=5 // pred_region
        %s232 = ssub.s32 %s16, 1
        // Predicated region
        $region13: #{mlp_forward.1} parent=11 // pred_check
          %p233 = pneg %p54
        $region14: #{mlp_forward.1} parent=11 // pred_check_branch
          %235 = sbr.rel (%p233) target = $region16
        $region15: #{mlp_forward.1} parent=11 // pred_region
          %s236 = smul.u32 2, %s25
          %p237 = scmp.lt.s32.totalorder %s236, 1
          %s238 = scalar_select %p237, %s236, 1
          %s239 = smul.addr %s238, 4
          %s240 = scalar_lea.vmem %s0, %s239
          %s241 = smul.u32 2, %s25
        $region16: #{mlp_forward.1} parent=11 // pred_fallthru
          _
        // Predicated region
        $region17: #{mlp_forward.1} parent=11 // pred_check
          %p242 = pneg %p75
        $region18: #{mlp_forward.1} parent=11 // pred_check_branch
          %244 = sbr.rel (%p242) target = $region20
        $region19: #{mlp_forward.1} parent=11 // pred_region
          %246 = vsyncadd [#allocation3], 0
          %s247 = sshll.u32 %s1, 4
          %s248 = int_to_ptr.hbm [resolvable:$true] %s247
          %s249 = sshll.u32 [#allocation2], 4
          %s250 = int_to_ptr.vmem [resolvable:$true] %s249
          %255 = dma.hbm_to_vmem [thread:$0]  %s248, 1024, %s250, [#allocation3], 128, 128, 8
        $region20: #{mlp_forward.1} parent=11 // pred_fallthru
          _
        // Predicated region
        $region21: #{mlp_forward.1} parent=11 // pred_check
          %p256 = pneg %p96
        $region22: #{mlp_forward.1} parent=11 // pred_check_branch
          %258 = sbr.rel (%p256) target = $region24
        $region23: #{mlp_forward.1} parent=11 // pred_region
          %260 = vsyncadd [#allocation5], 0
          %s262 = sshll.u32 %s2, 4
          %s263 = int_to_ptr.hbm [resolvable:$true] %s262
          %s264 = sshll.u32 [#allocation4], 4
          %s265 = int_to_ptr.vmem [resolvable:$true] %s264
          %267 = dma.hbm_to_vmem [thread:$0]  %s263, 32, %s265, [#allocation5]
        $region24: #{mlp_forward.1} parent=11 // pred_fallthru
          _
        // Predicated region
        $region25: #{mlp_forward.1} parent=11 // pred_check
          %p268 = pneg %p117
        $region26: #{mlp_forward.1} parent=11 // pred_check_branch
          %270 = sbr.rel (%p268) target = $region28
        $region27: #{mlp_forward.1} parent=11 // pred_region
          %272 = vsyncadd [#allocation5], 0
          %s273 = sshll.u32 %s3, 4
          %s274 = int_to_ptr.hbm [resolvable:$true] %s273
          %s275 = sshll.u32 [#allocation6], 4
          %s276 = int_to_ptr.vmem [resolvable:$true] %s275
          %281 = dma.hbm_to_vmem [thread:$0]  %s274, 4096, %s276, [#allocation5], 128, 128, 8
        $region28: #{mlp_forward.1} parent=11 // pred_fallthru
          _
        // Predicated region
        $region29: #{mlp_forward.1} parent=11 // pred_check
          %p282 = pneg %p138
        $region30: #{mlp_forward.1} parent=11 // pred_check_branch
          %284 = sbr.rel (%p282) target = $region32
        $region31: #{mlp_forward.1} parent=11 // pred_region
          %286 = vsyncadd [#allocation8], 0
          %s288 = sshll.u32 %s4, 4
          %s289 = int_to_ptr.hbm [resolvable:$true] %s288
          %s290 = sshll.u32 [#allocation7], 4
          %s291 = int_to_ptr.vmem [resolvable:$true] %s290
          %293 = dma.hbm_to_vmem [thread:$0]  %s289, 32, %s291, [#allocation8]
        $region32: #{mlp_forward.1} parent=11 // pred_fallthru
          _
      $region12: #{mlp_forward.1} parent=5 // pred_fallthru
        _
      %p294 = scmp.lt.s32.totalorder %s16, 2
      // Predicated region
      $region33: #{mlp_forward.1} parent=5 // pred_check
        %p295 = pneg %p294
      $region34: #{mlp_forward.1} parent=5 // pred_check_branch
        %297 = sbr.rel (%p295) target = $region36
      $region35: #{mlp_forward.1} parent=5 // pred_region
        // Predicated region
        $region37: #{mlp_forward.1} parent=35 // pred_check
          %p298 = pneg %p158
        $region38: #{mlp_forward.1} parent=35 // pred_check_branch
          %300 = sbr.rel (%p298) target = $region40
        $region39: #{mlp_forward.1} parent=35 // pred_region
          %s301 = sand.u32 %s16, 1
          %s302 = scalar_lea.sflag [#allocation3], %s301
          %s303 = sand.u32 %s148, 1
          %s304 = smul.addr %s303, 2048
          %s305 = scalar_lea.vmem [#allocation9], %s304
          %s306 = smul.u32 16, %s24
          %308 = vsyncadd %s302, 0
          %s309 = smul.addr %s306, 4
          %s310 = scalar_lea.hbm %s5, %s309
          %s311 = sshll.u32 %s310, 4
          %s312 = int_to_ptr.hbm [resolvable:$true] %s311
          %s313 = sshll.u32 %s305, 4
          %s314 = int_to_ptr.vmem [resolvable:$true] %s313
          %319 = dma.hbm_to_vmem [thread:$0]  %s312, 32768, %s314, %s302, 2048, 1024, 64
        $region40: #{mlp_forward.1} parent=35 // pred_fallthru
          _
        // Predicated region
        $region41: #{mlp_forward.1} parent=35 // pred_check
          %p320 = pneg %p184
        $region42: #{mlp_forward.1} parent=35 // pred_check_branch
          %322 = sbr.rel (%p320) target = $region44
        $region43: #{mlp_forward.1} parent=35 // pred_region
          %s323 = sand.u32 %s16, 1
          %s324 = scalar_lea.sflag [#allocation3], %s323
          %s325 = sand.u32 %s174, 1
          %s326 = smul.addr %s325, 16
          %s327 = scalar_lea.vmem [#allocation10], %s326
          %s328 = smul.u32 16, %s24
          %330 = vsyncadd %s324, 0
          %s331 = scalar_lea.hbm %s6, %s328
          %s333 = sshll.u32 %s331, 4
          %s334 = int_to_ptr.hbm [resolvable:$true] %s333
          %s335 = sshll.u32 %s327, 4
          %s336 = int_to_ptr.vmem [resolvable:$true] %s335
          %338 = dma.hbm_to_vmem [thread:$0]  %s334, 256, %s336, %s324
        $region44: #{mlp_forward.1} parent=35 // pred_fallthru
          _
      $region36: #{mlp_forward.1} parent=5 // pred_fallthru
        _
      %p339 = scmp.le.s32.totalorder 1, %s16
      %p340 = scmp.lt.s32.totalorder %s16, 3
      %p341 = pnand %p339, %p340
      %p342 = pneg %p341
      // Predicated region
      $region45: #{mlp_forward.1} parent=5 // pred_check
        _
      $region46: #{mlp_forward.1} parent=5 // pred_check_branch
        %344 = sbr.rel (%p341) target = $region48
      $region47: #{mlp_forward.1} parent=5 // pred_region
        %s345 = ssub.s32 %s16, 1
        // Predicated region
        $region49: #{mlp_forward.1} parent=47 // pred_check
          %p346 = pneg %p75
        $region50: #{mlp_forward.1} parent=47 // pred_check_branch
          %348 = sbr.rel (%p346) target = $region52
        $region51: #{mlp_forward.1} parent=47 // pred_region
          %350 = dma.done [#allocation3], 1024
        $region52: #{mlp_forward.1} parent=47 // pred_fallthru
          _
        // Predicated region
        $region53: #{mlp_forward.1} parent=47 // pred_check
          %p351 = pneg %p96
        $region54: #{mlp_forward.1} parent=47 // pred_check_branch
          %353 = sbr.rel (%p351) target = $region56
        $region55: #{mlp_forward.1} parent=47 // pred_region
          %355 = dma.done [#allocation5], 32
        $region56: #{mlp_forward.1} parent=47 // pred_fallthru
          _
        // Predicated region
        $region57: #{mlp_forward.1} parent=47 // pred_check
          %p356 = pneg %p117
        $region58: #{mlp_forward.1} parent=47 // pred_check_branch
          %358 = sbr.rel (%p356) target = $region60
        $region59: #{mlp_forward.1} parent=47 // pred_region
          %360 = dma.done [#allocation5], 4096
        $region60: #{mlp_forward.1} parent=47 // pred_fallthru
          _
        // Predicated region
        $region61: #{mlp_forward.1} parent=47 // pred_check
          %p361 = pneg %p138
        $region62: #{mlp_forward.1} parent=47 // pred_check_branch
          %363 = sbr.rel (%p361) target = $region64
        $region63: #{mlp_forward.1} parent=47 // pred_region
          %365 = dma.done [#allocation8], 32
        $region64: #{mlp_forward.1} parent=47 // pred_fallthru
          _
        %s366 = sand.u32 %s21, 1
        %s367 = scalar_lea.sflag [#allocation3], %s366
        %s368 = sand.u32 %s151, 1
        %s369 = smul.addr %s368, 2048
        %s370 = scalar_lea.vmem [#allocation9], %s369
        // Predicated region
        $region65: #{mlp_forward.1} parent=47 // pred_check
          %p371 = pneg %p164
        $region66: #{mlp_forward.1} parent=47 // pred_check_branch
          %373 = sbr.rel (%p371) target = $region68
        $region67: #{mlp_forward.1} parent=47 // pred_region
          %375 = dma.done %s367, 32768
        $region68: #{mlp_forward.1} parent=47 // pred_fallthru
          _
        %s376 = sand.u32 %s21, 1
        %s377 = scalar_lea.sflag [#allocation3], %s376
        %s378 = sand.u32 %s177, 1
        %s379 = smul.addr %s378, 16
        %s380 = scalar_lea.vmem [#allocation10], %s379
        // Predicated region
        $region69: #{mlp_forward.1} parent=47 // pred_check
          %p381 = pneg %p190
        $region70: #{mlp_forward.1} parent=47 // pred_check_branch
          %383 = sbr.rel (%p381) target = $region72
        $region71: #{mlp_forward.1} parent=47 // pred_region
          %385 = dma.done %s377, 256
        $region72: #{mlp_forward.1} parent=47 // pred_fallthru
          _
        %s386 = smul.u32 2, %s25
        %p387 = scmp.lt.s32.totalorder %s386, 1
        %s388 = scalar_select %p387, %s386, 1
        %s389 = smul.addr %s388, 4
        %s390 = scalar_lea.vmem %s0, %s389
        %p391 = pneg %p54
        %p392 = pneg %p51
        %p393 = pneg %p75
        %p394 = pneg %p72
        %p395 = pneg %p96
        %p396 = pneg %p93
        %p397 = pneg %p117
        %p398 = pneg %p114
        %p399 = pneg %p138
        %p400 = pneg %p135
        %s401 = sand.u32 %s21, 1
        %s402 = scalar_lea.sflag [#allocation3], %s401
        %s403 = sand.u32 %s151, 1
        %s404 = smul.addr %s403, 2048
        %s405 = scalar_lea.vmem [#allocation9], %s404
        %p406 = pneg %p164
        %p407 = pneg %p161
        %s408 = sand.u32 %s21, 1
        %s409 = scalar_lea.sflag [#allocation3], %s408
        %s410 = sand.u32 %s177, 1
        %s411 = smul.addr %s410, 16
        %s412 = scalar_lea.vmem [#allocation10], %s411
        %p413 = pneg %p190
        %p414 = pneg %p187
        %p415 = pneg %p218
        %p416 = pneg %p215
        %s417 = sand.u32 %s205, 1
        %s418 = sand.u32 %s205, 1
        %s419 = smul.addr %s418, 256
        %s420 = scalar_lea.vmem [#allocation11], %s419
        %s421 = smul.u32 2, %s25
        %p422 = scmp.lt.s32.totalorder %s421, 1
        %s423 = scalar_select %p422, %s421, 1
        %s424 = smul.addr %s423, 4
        %s425 = scalar_lea.vmem %s0, %s424
        %s426 = smul.u32 2, %s25
        %s427 = smul.u32 16, %s26
        %s428 = smul.u32 16, %s26
        %s429 = smul.u32 2, %s25
        %s430 = smul.u32 16, %s26
        %v432 = vld [vmem:[%s425] sm:$0xf]
        %v433 = vld [vmem:[%s425 + $0x4] sm:$0xf]
        %v434 = vld [vmem:[#allocation2] sm:$0xff]
        %v435 = vld [vmem:[#allocation2 + $0x8] sm:$0xff]
        %v436 = vld [vmem:[#allocation2 + $0x10] sm:$0xff]
        %v437 = vld [vmem:[#allocation2 + $0x18] sm:$0xff]
        %v438 = vld [vmem:[#allocation2 + $0x20] sm:$0xff]
        %v439 = vld [vmem:[#allocation2 + $0x28] sm:$0xff]
        %v440 = vld [vmem:[#allocation2 + $0x30] sm:$0xff]
        %v441 = vld [vmem:[#allocation2 + $0x38] sm:$0xff]
        %v442 = vld [vmem:[#allocation4] sm:$0x3]
        %v444 = vperm.slane %v442, 0
        %v445 = vperm.slane %v442, 1
        %v450 = vunpack.c.l.b16 %v432
        %v451 = vunpack.c.l.b16 %v433
        %v452 = vpack.c.b16 %v451, %v450
        %v461 = vunpack.c.l.b16 %v434
        %v462 = vunpack.c.h.b16 %v434
        %v463 = vunpack.c.l.b16 %v435
        %v464 = vunpack.c.h.b16 %v435
        %v465 = vunpack.c.l.b16 %v436
        %v466 = vunpack.c.h.b16 %v436
        %v467 = vunpack.c.l.b16 %v437
        %v468 = vunpack.c.h.b16 %v437
        %v469 = vunpack.c.l.b16 %v438
        %v470 = vunpack.c.h.b16 %v438
        %v471 = vunpack.c.l.b16 %v439
        %v472 = vunpack.c.h.b16 %v439
        %v473 = vunpack.c.l.b16 %v440
        %v474 = vunpack.c.h.b16 %v440
        %v475 = vunpack.c.l.b16 %v441
        %v476 = vunpack.c.h.b16 %v441
        %v477 = vpack.c.b16 %v463, %v461
        %v478 = vpack.c.b16 %v464, %v462
        %v479 = vpack.c.b16 %v467, %v465
        %v480 = vpack.c.b16 %v468, %v466
        %v481 = vpack.c.b16 %v471, %v469
        %v482 = vpack.c.b16 %v472, %v470
        %v483 = vpack.c.b16 %v475, %v473
        %v484 = vpack.c.b16 %v476, %v474
        %vm493 = vcmask 523264
        %v495 = vsel %vm493, %v452, 0
        %497 = vmatpush.bf16.msra.mxu0 0
        %498 = vmatpush.bf16.msra.mxu0 0
        %499 = vmatpush.bf16.msra.mxu0 0
        %500 = vmatpush.bf16.msra.mxu0 0
        %501 = vmatpush.bf16.msra.mxu0 %v483
        %502 = vmatpush.bf16.msra.mxu0 %v481
        %503 = vmatpush.bf16.msra.mxu0 %v479
        %504 = vmatpush.bf16.msra.mxu0 %v477
        %505 = vmatmul.bf16.gmra.mxu0 %v495
        %v506 = vpop.f32.mrf.mxu0
        %v507 = vadd.f32 %v444, %v506
        %v508 = vpop.f32.mrf.mxu0
        %v509 = vadd.f32 %v444, %v508
        %510 = vdwg.mxu0
        %511 = vmatpush.bf16.msra.mxu0 0
        %512 = vmatpush.bf16.msra.mxu0 0
        %513 = vmatpush.bf16.msra.mxu0 0
        %514 = vmatpush.bf16.msra.mxu0 0
        %515 = vmatpush.bf16.msra.mxu0 %v484
        %516 = vmatpush.bf16.msra.mxu0 %v482
        %517 = vmatpush.bf16.msra.mxu0 %v480
        %518 = vmatpush.bf16.msra.mxu0 %v478
        %519 = vmatmul.bf16.gmra.mxu0 %v495
        %v520 = vpop.f32.mrf.mxu0
        %v521 = vadd.f32 %v445, %v520
        %v522 = vpop.f32.mrf.mxu0
        %v523 = vadd.f32 %v445, %v522
        %524 = vdwg.mxu0
        %v525 = vmax.f32 %v507, 0.0
        %v526 = vmax.f32 %v521, 0.0
        %v527 = vmax.f32 %v509, 0.0
        %v528 = vmax.f32 %v523, 0.0
        %v529 = vpack.c.bf16 %v527, %v525
        %v530 = vpack.c.bf16 %v528, %v526
        %v531 = vld [vmem:[#allocation6] sm:$0xff]
        %v532 = vld [vmem:[#allocation6 + $0x8] sm:$0xff]
        %v533 = vld [vmem:[#allocation6 + $0x10] sm:$0xff]
        %v534 = vld [vmem:[#allocation6 + $0x18] sm:$0xff]
        %v535 = vld [vmem:[#allocation6 + $0x20] sm:$0xff]
        %v536 = vld [vmem:[#allocation6 + $0x28] sm:$0xff]
        %v537 = vld [vmem:[#allocation6 + $0x30] sm:$0xff]
        %v538 = vld [vmem:[#allocation6 + $0x38] sm:$0xff]
        %v539 = vld [vmem:[#allocation6 + $0x40] sm:$0xff]
        %v540 = vld [vmem:[#allocation6 + $0x48] sm:$0xff]
        %v541 = vld [vmem:[#allocation6 + $0x50] sm:$0xff]
        %v542 = vld [vmem:[#allocation6 + $0x58] sm:$0xff]
        %v543 = vld [vmem:[#allocation6 + $0x60] sm:$0xff]
        %v544 = vld [vmem:[#allocation6 + $0x68] sm:$0xff]
        %v545 = vld [vmem:[#allocation6 + $0x70] sm:$0xff]
        %v546 = vld [vmem:[#allocation6 + $0x78] sm:$0xff]
        %v547 = vld [vmem:[#allocation6 + $0x80] sm:$0xff]
        %v548 = vld [vmem:[#allocation6 + $0x88] sm:$0xff]
        %v549 = vld [vmem:[#allocation6 + $0x90] sm:$0xff]
        %v550 = vld [vmem:[#allocation6 + $0x98] sm:$0xff]
        %v551 = vld [vmem:[#allocation6 + $0xa0] sm:$0xff]
        %v552 = vld [vmem:[#allocation6 + $0xa8] sm:$0xff]
        %v553 = vld [vmem:[#allocation6 + $0xb0] sm:$0xff]
        %v554 = vld [vmem:[#allocation6 + $0xb8] sm:$0xff]
        %v555 = vld [vmem:[#allocation6 + $0xc0] sm:$0xff]
        %v556 = vld [vmem:[#allocation6 + $0xc8] sm:$0xff]
        %v557 = vld [vmem:[#allocation6 + $0xd0] sm:$0xff]
        %v558 = vld [vmem:[#allocation6 + $0xd8] sm:$0xff]
        %v559 = vld [vmem:[#allocation6 + $0xe0] sm:$0xff]
        %v560 = vld [vmem:[#allocation6 + $0xe8] sm:$0xff]
        %v561 = vld [vmem:[#allocation6 + $0xf0] sm:$0xff]
        %v562 = vld [vmem:[#allocation6 + $0xf8] sm:$0xff]
        %v563 = vld [vmem:[#allocation7] sm:$0x3]
        %v565 = vperm.slane %v563, 0
        %v566 = vperm.slane %v563, 1
        %v601 = vunpack.c.l.b16 %v531
        %v602 = vunpack.c.h.b16 %v531
        %v603 = vunpack.c.l.b16 %v532
        %v604 = vunpack.c.h.b16 %v532
        %v605 = vunpack.c.l.b16 %v533
        %v606 = vunpack.c.h.b16 %v533
        %v607 = vunpack.c.l.b16 %v534
        %v608 = vunpack.c.h.b16 %v534
        %v609 = vunpack.c.l.b16 %v535
        %v610 = vunpack.c.h.b16 %v535
        %v611 = vunpack.c.l.b16 %v536
        %v612 = vunpack.c.h.b16 %v536
        %v613 = vunpack.c.l.b16 %v537
        %v614 = vunpack.c.h.b16 %v537
        %v615 = vunpack.c.l.b16 %v538
        %v616 = vunpack.c.h.b16 %v538
        %v617 = vunpack.c.l.b16 %v539
        %v618 = vunpack.c.h.b16 %v539
        %v619 = vunpack.c.l.b16 %v540
        %v620 = vunpack.c.h.b16 %v540
        %v621 = vunpack.c.l.b16 %v541
        %v622 = vunpack.c.h.b16 %v541
        %v623 = vunpack.c.l.b16 %v542
        %v624 = vunpack.c.h.b16 %v542
        %v625 = vunpack.c.l.b16 %v543
        %v626 = vunpack.c.h.b16 %v543
        %v627 = vunpack.c.l.b16 %v544
        %v628 = vunpack.c.h.b16 %v544
        %v629 = vunpack.c.l.b16 %v545
        %v630 = vunpack.c.h.b16 %v545
        %v631 = vunpack.c.l.b16 %v546
        %v632 = vunpack.c.h.b16 %v546
        %v633 = vunpack.c.l.b16 %v547
        %v634 = vunpack.c.h.b16 %v547
        %v635 = vunpack.c.l.b16 %v548
        %v636 = vunpack.c.h.b16 %v548
        %v637 = vunpack.c.l.b16 %v549
        %v638 = vunpack.c.h.b16 %v549
        %v639 = vunpack.c.l.b16 %v550
        %v640 = vunpack.c.h.b16 %v550
        %v641 = vunpack.c.l.b16 %v551
        %v642 = vunpack.c.h.b16 %v551
        %v643 = vunpack.c.l.b16 %v552
        %v644 = vunpack.c.h.b16 %v552
        %v645 = vunpack.c.l.b16 %v553
        %v646 = vunpack.c.h.b16 %v553
        %v647 = vunpack.c.l.b16 %v554
        %v648 = vunpack.c.h.b16 %v554
        %v649 = vunpack.c.l.b16 %v555
        %v650 = vunpack.c.h.b16 %v555
        %v651 = vunpack.c.l.b16 %v556
        %v652 = vunpack.c.h.b16 %v556
        %v653 = vunpack.c.l.b16 %v557
        %v654 = vunpack.c.h.b16 %v557
        %v655 = vunpack.c.l.b16 %v558
        %v656 = vunpack.c.h.b16 %v558
        %v657 = vunpack.c.l.b16 %v559
        %v658 = vunpack.c.h.b16 %v559
        %v659 = vunpack.c.l.b16 %v560
        %v660 = vunpack.c.h.b16 %v560
        %v661 = vunpack.c.l.b16 %v561
        %v662 = vunpack.c.h.b16 %v561
        %v663 = vunpack.c.l.b16 %v562
        %v664 = vunpack.c.h.b16 %v562
        %v665 = vpack.c.b16 %v603, %v601
        %v666 = vpack.c.b16 %v604, %v602
        %v667 = vpack.c.b16 %v607, %v605
        %v668 = vpack.c.b16 %v608, %v606
        %v669 = vpack.c.b16 %v611, %v609
        %v670 = vpack.c.b16 %v612, %v610
        %v671 = vpack.c.b16 %v615, %v613
        %v672 = vpack.c.b16 %v616, %v614
        %v673 = vpack.c.b16 %v619, %v617
        %v674 = vpack.c.b16 %v620, %v618
        %v675 = vpack.c.b16 %v623, %v621
        %v676 = vpack.c.b16 %v624, %v622
        %v677 = vpack.c.b16 %v627, %v625
        %v678 = vpack.c.b16 %v628, %v626
        %v679 = vpack.c.b16 %v631, %v629
        %v680 = vpack.c.b16 %v632, %v630
        %v681 = vpack.c.b16 %v635, %v633
        %v682 = vpack.c.b16 %v636, %v634
        %v683 = vpack.c.b16 %v639, %v637
        %v684 = vpack.c.b16 %v640, %v638
        %v685 = vpack.c.b16 %v643, %v641
        %v686 = vpack.c.b16 %v644, %v642
        %v687 = vpack.c.b16 %v647, %v645
        %v688 = vpack.c.b16 %v648, %v646
        %v689 = vpack.c.b16 %v651, %v649
        %v690 = vpack.c.b16 %v652, %v650
        %v691 = vpack.c.b16 %v655, %v653
        %v692 = vpack.c.b16 %v656, %v654
        %v693 = vpack.c.b16 %v659, %v657
        %v694 = vpack.c.b16 %v660, %v658
        %v695 = vpack.c.b16 %v663, %v661
        %v696 = vpack.c.b16 %v664, %v662
        %729 = vmatpush.bf16.msra.mxu0 %v679
        %730 = vmatpush.bf16.msra.mxu0 %v677
        %731 = vmatpush.bf16.msra.mxu0 %v675
        %732 = vmatpush.bf16.msra.mxu0 %v673
        %733 = vmatpush.bf16.msra.mxu0 %v671
        %734 = vmatpush.bf16.msra.mxu0 %v669
        %735 = vmatpush.bf16.msra.mxu0 %v667
        %736 = vmatpush.bf16.msra.mxu0 %v665
        %737 = vmatmul.bf16.gmra.mxu0 %v529
        %v738 = vpop.f32.mrf.mxu0
        %v739 = vadd.f32 %v565, %v738
        %v740 = vpop.f32.mrf.mxu0
        %v741 = vadd.f32 %v565, %v740
        %742 = vdwg.mxu0
        %743 = vmatpush.bf16.msra.mxu0 %v695
        %744 = vmatpush.bf16.msra.mxu0 %v693
        %745 = vmatpush.bf16.msra.mxu0 %v691
        %746 = vmatpush.bf16.msra.mxu0 %v689
        %747 = vmatpush.bf16.msra.mxu0 %v687
        %748 = vmatpush.bf16.msra.mxu0 %v685
        %749 = vmatpush.bf16.msra.mxu0 %v683
        %750 = vmatpush.bf16.msra.mxu0 %v681
        %751 = vmatmul.bf16.gmra.mxu0 %v530
        %v752 = vpop.f32.mrf.mxu0
        %v753 = vadd.f32 %v739, %v752
        %v754 = vpop.f32.mrf.mxu0
        %v755 = vadd.f32 %v741, %v754
        %756 = vdwg.mxu0
        %757 = vmatpush.bf16.msra.mxu0 %v680
        %758 = vmatpush.bf16.msra.mxu0 %v678
        %759 = vmatpush.bf16.msra.mxu0 %v676
        %760 = vmatpush.bf16.msra.mxu0 %v674
        %761 = vmatpush.bf16.msra.mxu0 %v672
        %762 = vmatpush.bf16.msra.mxu0 %v670
        %763 = vmatpush.bf16.msra.mxu0 %v668
        %764 = vmatpush.bf16.msra.mxu0 %v666
        %765 = vmatmul.bf16.gmra.mxu0 %v529
        %v766 = vpop.f32.mrf.mxu0
        %v767 = vadd.f32 %v566, %v766
        %v768 = vpop.f32.mrf.mxu0
        %v769 = vadd.f32 %v566, %v768
        %770 = vdwg.mxu0
        %771 = vmatpush.bf16.msra.mxu0 %v696
        %772 = vmatpush.bf16.msra.mxu0 %v694
        %773 = vmatpush.bf16.msra.mxu0 %v692
        %774 = vmatpush.bf16.msra.mxu0 %v690
        %775 = vmatpush.bf16.msra.mxu0 %v688
        %776 = vmatpush.bf16.msra.mxu0 %v686
        %777 = vmatpush.bf16.msra.mxu0 %v684
        %778 = vmatpush.bf16.msra.mxu0 %v682
        %779 = vmatmul.bf16.gmra.mxu0 %v530
        %v780 = vpop.f32.mrf.mxu0
        %v781 = vadd.f32 %v767, %v780
        %v782 = vpop.f32.mrf.mxu0
        %v783 = vadd.f32 %v769, %v782
        %784 = vdwg.mxu0
        %v785 = vmax.f32 %v753, 0.0
        %v786 = vmax.f32 %v781, 0.0
        %v787 = vmax.f32 %v755, 0.0
        %v788 = vmax.f32 %v783, 0.0
        %v789 = vpack.c.bf16 %v787, %v785
        %v790 = vpack.c.bf16 %v788, %v786
        %v791 = vld [vmem:[%s370] sm:$0xff]
        %v792 = vld [vmem:[%s370 + $0x8] sm:$0xff]
        %v793 = vld [vmem:[%s370 + $0x10] sm:$0xff]
        %v794 = vld [vmem:[%s370 + $0x18] sm:$0xff]
        %v795 = vld [vmem:[%s370 + $0x20] sm:$0xff]
        %v796 = vld [vmem:[%s370 + $0x28] sm:$0xff]
        %v797 = vld [vmem:[%s370 + $0x30] sm:$0xff]
        %v798 = vld [vmem:[%s370 + $0x38] sm:$0xff]
        %v799 = vld [vmem:[%s370 + $0x40] sm:$0xff]
        %v800 = vld [vmem:[%s370 + $0x48] sm:$0xff]
        %v801 = vld [vmem:[%s370 + $0x50] sm:$0xff]
        %v802 = vld [vmem:[%s370 + $0x58] sm:$0xff]
        %v803 = vld [vmem:[%s370 + $0x60] sm:$0xff]
        %v804 = vld [vmem:[%s370 + $0x68] sm:$0xff]
        %v805 = vld [vmem:[%s370 + $0x70] sm:$0xff]
        %v806 = vld [vmem:[%s370 + $0x78] sm:$0xff]
        %v807 = vld [vmem:[%s370 + $0x80] sm:$0xff]
        %v808 = vld [vmem:[%s370 + $0x88] sm:$0xff]
        %v809 = vld [vmem:[%s370 + $0x90] sm:$0xff]
        %v810 = vld [vmem:[%s370 + $0x98] sm:$0xff]
        %v811 = vld [vmem:[%s370 + $0xa0] sm:$0xff]
        %v812 = vld [vmem:[%s370 + $0xa8] sm:$0xff]
        %v813 = vld [vmem:[%s370 + $0xb0] sm:$0xff]
        %v814 = vld [vmem:[%s370 + $0xb8] sm:$0xff]
        %v815 = vld [vmem:[%s370 + $0xc0] sm:$0xff]
        %v816 = vld [vmem:[%s370 + $0xc8] sm:$0xff]
        %v817 = vld [vmem:[%s370 + $0xd0] sm:$0xff]
        %v818 = vld [vmem:[%s370 + $0xd8] sm:$0xff]
        %v819 = vld [vmem:[%s370 + $0xe0] sm:$0xff]
        %v820 = vld [vmem:[%s370 + $0xe8] sm:$0xff]
        %v821 = vld [vmem:[%s370 + $0xf0] sm:$0xff]
        %v822 = vld [vmem:[%s370 + $0xf8] sm:$0xff]
        %v823 = vld [vmem:[%s370 + $0x100] sm:$0xff]
        %v824 = vld [vmem:[%s370 + $0x108] sm:$0xff]
        %v825 = vld [vmem:[%s370 + $0x110] sm:$0xff]
        %v826 = vld [vmem:[%s370 + $0x118] sm:$0xff]
        %v827 = vld [vmem:[%s370 + $0x120] sm:$0xff]
        %v828 = vld [vmem:[%s370 + $0x128] sm:$0xff]
        %v829 = vld [vmem:[%s370 + $0x130] sm:$0xff]
        %v830 = vld [vmem:[%s370 + $0x138] sm:$0xff]
        %v831 = vld [vmem:[%s370 + $0x140] sm:$0xff]
        %v832 = vld [vmem:[%s370 + $0x148] sm:$0xff]
        %v833 = vld [vmem:[%s370 + $0x150] sm:$0xff]
        %v834 = vld [vmem:[%s370 + $0x158] sm:$0xff]
        %v835 = vld [vmem:[%s370 + $0x160] sm:$0xff]
        %v836 = vld [vmem:[%s370 + $0x168] sm:$0xff]
        %v837 = vld [vmem:[%s370 + $0x170] sm:$0xff]
        %v838 = vld [vmem:[%s370 + $0x178] sm:$0xff]
        %v839 = vld [vmem:[%s370 + $0x180] sm:$0xff]
        %v840 = vld [vmem:[%s370 + $0x188] sm:$0xff]
        %v841 = vld [vmem:[%s370 + $0x190] sm:$0xff]
        %v842 = vld [vmem:[%s370 + $0x198] sm:$0xff]
        %v843 = vld [vmem:[%s370 + $0x1a0] sm:$0xff]
        %v844 = vld [vmem:[%s370 + $0x1a8] sm:$0xff]
        %v845 = vld [vmem:[%s370 + $0x1b0] sm:$0xff]
        %v846 = vld [vmem:[%s370 + $0x1b8] sm:$0xff]
        %v847 = vld [vmem:[%s370 + $0x1c0] sm:$0xff]
        %v848 = vld [vmem:[%s370 + $0x1c8] sm:$0xff]
        %v849 = vld [vmem:[%s370 + $0x1d0] sm:$0xff]
        %v850 = vld [vmem:[%s370 + $0x1d8] sm:$0xff]
        %v851 = vld [vmem:[%s370 + $0x1e0] sm:$0xff]
        %v852 = vld [vmem:[%s370 + $0x1e8] sm:$0xff]
        %v853 = vld [vmem:[%s370 + $0x1f0] sm:$0xff]
        %v854 = vld [vmem:[%s370 + $0x1f8] sm:$0xff]
        %v855 = vld [vmem:[%s370 + $0x200] sm:$0xff]
        %v856 = vld [vmem:[%s370 + $0x208] sm:$0xff]
        %v857 = vld [vmem:[%s370 + $0x210] sm:$0xff]
        %v858 = vld [vmem:[%s370 + $0x218] sm:$0xff]
        %v859 = vld [vmem:[%s370 + $0x220] sm:$0xff]
        %v860 = vld [vmem:[%s370 + $0x228] sm:$0xff]
        %v861 = vld [vmem:[%s370 + $0x230] sm:$0xff]
        %v862 = vld [vmem:[%s370 + $0x238] sm:$0xff]
        %v863 = vld [vmem:[%s370 + $0x240] sm:$0xff]
        %v864 = vld [vmem:[%s370 + $0x248] sm:$0xff]
        %v865 = vld [vmem:[%s370 + $0x250] sm:$0xff]
        %v866 = vld [vmem:[%s370 + $0x258] sm:$0xff]
        %v867 = vld [vmem:[%s370 + $0x260] sm:$0xff]
        %v868 = vld [vmem:[%s370 + $0x268] sm:$0xff]
        %v869 = vld [vmem:[%s370 + $0x270] sm:$0xff]
        %v870 = vld [vmem:[%s370 + $0x278] sm:$0xff]
        %v871 = vld [vmem:[%s370 + $0x280] sm:$0xff]
        %v872 = vld [vmem:[%s370 + $0x288] sm:$0xff]
        %v873 = vld [vmem:[%s370 + $0x290] sm:$0xff]
        %v874 = vld [vmem:[%s370 + $0x298] sm:$0xff]
        %v875 = vld [vmem:[%s370 + $0x2a0] sm:$0xff]
        %v876 = vld [vmem:[%s370 + $0x2a8] sm:$0xff]
        %v877 = vld [vmem:[%s370 + $0x2b0] sm:$0xff]
        %v878 = vld [vmem:[%s370 + $0x2b8] sm:$0xff]
        %v879 = vld [vmem:[%s370 + $0x2c0] sm:$0xff]
        %v880 = vld [vmem:[%s370 + $0x2c8] sm:$0xff]
        %v881 = vld [vmem:[%s370 + $0x2d0] sm:$0xff]
        %v882 = vld [vmem:[%s370 + $0x2d8] sm:$0xff]
        %v883 = vld [vmem:[%s370 + $0x2e0] sm:$0xff]
        %v884 = vld [vmem:[%s370 + $0x2e8] sm:$0xff]
        %v885 = vld [vmem:[%s370 + $0x2f0] sm:$0xff]
        %v886 = vld [vmem:[%s370 + $0x2f8] sm:$0xff]
        %v887 = vld [vmem:[%s370 + $0x300] sm:$0xff]
        %v888 = vld [vmem:[%s370 + $0x308] sm:$0xff]
        %v889 = vld [vmem:[%s370 + $0x310] sm:$0xff]
        %v890 = vld [vmem:[%s370 + $0x318] sm:$0xff]
        %v891 = vld [vmem:[%s370 + $0x320] sm:$0xff]
        %v892 = vld [vmem:[%s370 + $0x328] sm:$0xff]
        %v893 = vld [vmem:[%s370 + $0x330] sm:$0xff]
        %v894 = vld [vmem:[%s370 + $0x338] sm:$0xff]
        %v895 = vld [vmem:[%s370 + $0x340] sm:$0xff]
        %v896 = vld [vmem:[%s370 + $0x348] sm:$0xff]
        %v897 = vld [vmem:[%s370 + $0x350] sm:$0xff]
        %v898 = vld [vmem:[%s370 + $0x358] sm:$0xff]
        %v899 = vld [vmem:[%s370 + $0x360] sm:$0xff]
        %v900 = vld [vmem:[%s370 + $0x368] sm:$0xff]
        %v901 = vld [vmem:[%s370 + $0x370] sm:$0xff]
        %v902 = vld [vmem:[%s370 + $0x378] sm:$0xff]
        %v903 = vld [vmem:[%s370 + $0x380] sm:$0xff]
        %v904 = vld [vmem:[%s370 + $0x388] sm:$0xff]
        %v905 = vld [vmem:[%s370 + $0x390] sm:$0xff]
        %v906 = vld [vmem:[%s370 + $0x398] sm:$0xff]
        %v907 = vld [vmem:[%s370 + $0x3a0] sm:$0xff]
        %v908 = vld [vmem:[%s370 + $0x3a8] sm:$0xff]
        %v909 = vld [vmem:[%s370 + $0x3b0] sm:$0xff]
        %v910 = vld [vmem:[%s370 + $0x3b8] sm:$0xff]
        %v911 = vld [vmem:[%s370 + $0x3c0] sm:$0xff]
        %v912 = vld [vmem:[%s370 + $0x3c8] sm:$0xff]
        %v913 = vld [vmem:[%s370 + $0x3d0] sm:$0xff]
        %v914 = vld [vmem:[%s370 + $0x3d8] sm:$0xff]
        %v915 = vld [vmem:[%s370 + $0x3e0] sm:$0xff]
        %v916 = vld [vmem:[%s370 + $0x3e8] sm:$0xff]
        %v917 = vld [vmem:[%s370 + $0x3f0] sm:$0xff]
        %v918 = vld [vmem:[%s370 + $0x3f8] sm:$0xff]
        %v919 = vld [vmem:[%s370 + $0x400] sm:$0xff]
        %v920 = vld [vmem:[%s370 + $0x408] sm:$0xff]
        %v921 = vld [vmem:[%s370 + $0x410] sm:$0xff]
        %v922 = vld [vmem:[%s370 + $0x418] sm:$0xff]
        %v923 = vld [vmem:[%s370 + $0x420] sm:$0xff]
        %v924 = vld [vmem:[%s370 + $0x428] sm:$0xff]
        %v925 = vld [vmem:[%s370 + $0x430] sm:$0xff]
        %v926 = vld [vmem:[%s370 + $0x438] sm:$0xff]
        %v927 = vld [vmem:[%s370 + $0x440] sm:$0xff]
        %v928 = vld [vmem:[%s370 + $0x448] sm:$0xff]
        %v929 = vld [vmem:[%s370 + $0x450] sm:$0xff]
        %v930 = vld [vmem:[%s370 + $0x458] sm:$0xff]
        %v931 = vld [vmem:[%s370 + $0x460] sm:$0xff]
        %v932 = vld [vmem:[%s370 + $0x468] sm:$0xff]
        %v933 = vld [vmem:[%s370 + $0x470] sm:$0xff]
        %v934 = vld [vmem:[%s370 + $0x478] sm:$0xff]
        %v935 = vld [vmem:[%s370 + $0x480] sm:$0xff]
        %v936 = vld [vmem:[%s370 + $0x488] sm:$0xff]
        %v937 = vld [vmem:[%s370 + $0x490] sm:$0xff]
        %v938 = vld [vmem:[%s370 + $0x498] sm:$0xff]
        %v939 = vld [vmem:[%s370 + $0x4a0] sm:$0xff]
        %v940 = vld [vmem:[%s370 + $0x4a8] sm:$0xff]
        %v941 = vld [vmem:[%s370 + $0x4b0] sm:$0xff]
        %v942 = vld [vmem:[%s370 + $0x4b8] sm:$0xff]
        %v943 = vld [vmem:[%s370 + $0x4c0] sm:$0xff]
        %v944 = vld [vmem:[%s370 + $0x4c8] sm:$0xff]
        %v945 = vld [vmem:[%s370 + $0x4d0] sm:$0xff]
        %v946 = vld [vmem:[%s370 + $0x4d8] sm:$0xff]
        %v947 = vld [vmem:[%s370 + $0x4e0] sm:$0xff]
        %v948 = vld [vmem:[%s370 + $0x4e8] sm:$0xff]
        %v949 = vld [vmem:[%s370 + $0x4f0] sm:$0xff]
        %v950 = vld [vmem:[%s370 + $0x4f8] sm:$0xff]
        %v951 = vld [vmem:[%s370 + $0x500] sm:$0xff]
        %v952 = vld [vmem:[%s370 + $0x508] sm:$0xff]
        %v953 = vld [vmem:[%s370 + $0x510] sm:$0xff]
        %v954 = vld [vmem:[%s370 + $0x518] sm:$0xff]
        %v955 = vld [vmem:[%s370 + $0x520] sm:$0xff]
        %v956 = vld [vmem:[%s370 + $0x528] sm:$0xff]
        %v957 = vld [vmem:[%s370 + $0x530] sm:$0xff]
        %v958 = vld [vmem:[%s370 + $0x538] sm:$0xff]
        %v959 = vld [vmem:[%s370 + $0x540] sm:$0xff]
        %v960 = vld [vmem:[%s370 + $0x548] sm:$0xff]
        %v961 = vld [vmem:[%s370 + $0x550] sm:$0xff]
        %v962 = vld [vmem:[%s370 + $0x558] sm:$0xff]
        %v963 = vld [vmem:[%s370 + $0x560] sm:$0xff]
        %v964 = vld [vmem:[%s370 + $0x568] sm:$0xff]
        %v965 = vld [vmem:[%s370 + $0x570] sm:$0xff]
        %v966 = vld [vmem:[%s370 + $0x578] sm:$0xff]
        %v967 = vld [vmem:[%s370 + $0x580] sm:$0xff]
        %v968 = vld [vmem:[%s370 + $0x588] sm:$0xff]
        %v969 = vld [vmem:[%s370 + $0x590] sm:$0xff]
        %v970 = vld [vmem:[%s370 + $0x598] sm:$0xff]
        %v971 = vld [vmem:[%s370 + $0x5a0] sm:$0xff]
        %v972 = vld [vmem:[%s370 + $0x5a8] sm:$0xff]
        %v973 = vld [vmem:[%s370 + $0x5b0] sm:$0xff]
        %v974 = vld [vmem:[%s370 + $0x5b8] sm:$0xff]
        %v975 = vld [vmem:[%s370 + $0x5c0] sm:$0xff]
        %v976 = vld [vmem:[%s370 + $0x5c8] sm:$0xff]
        %v977 = vld [vmem:[%s370 + $0x5d0] sm:$0xff]
        %v978 = vld [vmem:[%s370 + $0x5d8] sm:$0xff]
        %v979 = vld [vmem:[%s370 + $0x5e0] sm:$0xff]
        %v980 = vld [vmem:[%s370 + $0x5e8] sm:$0xff]
        %v981 = vld [vmem:[%s370 + $0x5f0] sm:$0xff]
        %v982 = vld [vmem:[%s370 + $0x5f8] sm:$0xff]
        %v983 = vld [vmem:[%s370 + $0x600] sm:$0xff]
        %v984 = vld [vmem:[%s370 + $0x608] sm:$0xff]
        %v985 = vld [vmem:[%s370 + $0x610] sm:$0xff]
        %v986 = vld [vmem:[%s370 + $0x618] sm:$0xff]
        %v987 = vld [vmem:[%s370 + $0x620] sm:$0xff]
        %v988 = vld [vmem:[%s370 + $0x628] sm:$0xff]
        %v989 = vld [vmem:[%s370 + $0x630] sm:$0xff]
        %v990 = vld [vmem:[%s370 + $0x638] sm:$0xff]
        %v991 = vld [vmem:[%s370 + $0x640] sm:$0xff]
        %v992 = vld [vmem:[%s370 + $0x648] sm:$0xff]
        %v993 = vld [vmem:[%s370 + $0x650] sm:$0xff]
        %v994 = vld [vmem:[%s370 + $0x658] sm:$0xff]
        %v995 = vld [vmem:[%s370 + $0x660] sm:$0xff]
        %v996 = vld [vmem:[%s370 + $0x668] sm:$0xff]
        %v997 = vld [vmem:[%s370 + $0x670] sm:$0xff]
        %v998 = vld [vmem:[%s370 + $0x678] sm:$0xff]
        %v999 = vld [vmem:[%s370 + $0x680] sm:$0xff]
        %v1000 = vld [vmem:[%s370 + $0x688] sm:$0xff]
        %v1001 = vld [vmem:[%s370 + $0x690] sm:$0xff]
        %v1002 = vld [vmem:[%s370 + $0x698] sm:$0xff]
        %v1003 = vld [vmem:[%s370 + $0x6a0] sm:$0xff]
        %v1004 = vld [vmem:[%s370 + $0x6a8] sm:$0xff]
        %v1005 = vld [vmem:[%s370 + $0x6b0] sm:$0xff]
        %v1006 = vld [vmem:[%s370 + $0x6b8] sm:$0xff]
        %v1007 = vld [vmem:[%s370 + $0x6c0] sm:$0xff]
        %v1008 = vld [vmem:[%s370 + $0x6c8] sm:$0xff]
        %v1009 = vld [vmem:[%s370 + $0x6d0] sm:$0xff]
        %v1010 = vld [vmem:[%s370 + $0x6d8] sm:$0xff]
        %v1011 = vld [vmem:[%s370 + $0x6e0] sm:$0xff]
        %v1012 = vld [vmem:[%s370 + $0x6e8] sm:$0xff]
        %v1013 = vld [vmem:[%s370 + $0x6f0] sm:$0xff]
        %v1014 = vld [vmem:[%s370 + $0x6f8] sm:$0xff]
        %v1015 = vld [vmem:[%s370 + $0x700] sm:$0xff]
        %v1016 = vld [vmem:[%s370 + $0x708] sm:$0xff]
        %v1017 = vld [vmem:[%s370 + $0x710] sm:$0xff]
        %v1018 = vld [vmem:[%s370 + $0x718] sm:$0xff]
        %v1019 = vld [vmem:[%s370 + $0x720] sm:$0xff]
        %v1020 = vld [vmem:[%s370 + $0x728] sm:$0xff]
        %v1021 = vld [vmem:[%s370 + $0x730] sm:$0xff]
        %v1022 = vld [vmem:[%s370 + $0x738] sm:$0xff]
        %v1023 = vld [vmem:[%s370 + $0x740] sm:$0xff]
        %v1024 = vld [vmem:[%s370 + $0x748] sm:$0xff]
        %v1025 = vld [vmem:[%s370 + $0x750] sm:$0xff]
        %v1026 = vld [vmem:[%s370 + $0x758] sm:$0xff]
        %v1027 = vld [vmem:[%s370 + $0x760] sm:$0xff]
        %v1028 = vld [vmem:[%s370 + $0x768] sm:$0xff]
        %v1029 = vld [vmem:[%s370 + $0x770] sm:$0xff]
        %v1030 = vld [vmem:[%s370 + $0x778] sm:$0xff]
        %v1031 = vld [vmem:[%s370 + $0x780] sm:$0xff]
        %v1032 = vld [vmem:[%s370 + $0x788] sm:$0xff]
        %v1033 = vld [vmem:[%s370 + $0x790] sm:$0xff]
        %v1034 = vld [vmem:[%s370 + $0x798] sm:$0xff]
        %v1035 = vld [vmem:[%s370 + $0x7a0] sm:$0xff]
        %v1036 = vld [vmem:[%s370 + $0x7a8] sm:$0xff]
        %v1037 = vld [vmem:[%s370 + $0x7b0] sm:$0xff]
        %v1038 = vld [vmem:[%s370 + $0x7b8] sm:$0xff]
        %v1039 = vld [vmem:[%s370 + $0x7c0] sm:$0xff]
        %v1040 = vld [vmem:[%s370 + $0x7c8] sm:$0xff]
        %v1041 = vld [vmem:[%s370 + $0x7d0] sm:$0xff]
        %v1042 = vld [vmem:[%s370 + $0x7d8] sm:$0xff]
        %v1043 = vld [vmem:[%s370 + $0x7e0] sm:$0xff]
        %v1044 = vld [vmem:[%s370 + $0x7e8] sm:$0xff]
        %v1045 = vld [vmem:[%s370 + $0x7f0] sm:$0xff]
        %v1046 = vld [vmem:[%s370 + $0x7f8] sm:$0xff]
        %v1047 = vld [vmem:[%s380] sm:$0xff]
        %v1048 = vld [vmem:[%s380 + $0x8] sm:$0xff]
        %v1051 = vperm.slane %v1047, 0
        %v1052 = vperm.slane %v1047, 1
        %v1053 = vperm.slane %v1047, 2
        %v1054 = vperm.slane %v1047, 3
        %v1055 = vperm.slane %v1047, 4
        %v1056 = vperm.slane %v1047, 5
        %v1057 = vperm.slane %v1047, 6
        %v1058 = vperm.slane %v1047, 7
        %v1059 = vperm.slane %v1048, 0
        %v1060 = vperm.slane %v1048, 1
        %v1061 = vperm.slane %v1048, 2
        %v1062 = vperm.slane %v1048, 3
        %v1063 = vperm.slane %v1048, 4
        %v1064 = vperm.slane %v1048, 5
        %v1065 = vperm.slane %v1048, 6
        %v1066 = vperm.slane %v1048, 7
        %v1339 = vunpack.c.l.b16 %v791
        %v1340 = vunpack.c.h.b16 %v791
        %v1341 = vunpack.c.l.b16 %v792
        %v1342 = vunpack.c.h.b16 %v792
        %v1343 = vunpack.c.l.b16 %v793
        %v1344 = vunpack.c.h.b16 %v793
        %v1345 = vunpack.c.l.b16 %v794
        %v1346 = vunpack.c.h.b16 %v794
        %v1347 = vunpack.c.l.b16 %v795
        %v1348 = vunpack.c.h.b16 %v795
        %v1349 = vunpack.c.l.b16 %v796
        %v1350 = vunpack.c.h.b16 %v796
        %v1351 = vunpack.c.l.b16 %v797
        %v1352 = vunpack.c.h.b16 %v797
        %v1353 = vunpack.c.l.b16 %v798
        %v1354 = vunpack.c.h.b16 %v798
        %v1355 = vunpack.c.l.b16 %v799
        %v1356 = vunpack.c.h.b16 %v799
        %v1357 = vunpack.c.l.b16 %v800
        %v1358 = vunpack.c.h.b16 %v800
        %v1359 = vunpack.c.l.b16 %v801
        %v1360 = vunpack.c.h.b16 %v801
        %v1361 = vunpack.c.l.b16 %v802
        %v1362 = vunpack.c.h.b16 %v802
        %v1363 = vunpack.c.l.b16 %v803
        %v1364 = vunpack.c.h.b16 %v803
        %v1365 = vunpack.c.l.b16 %v804
        %v1366 = vunpack.c.h.b16 %v804
        %v1367 = vunpack.c.l.b16 %v805
        %v1368 = vunpack.c.h.b16 %v805
        %v1369 = vunpack.c.l.b16 %v806
        %v1370 = vunpack.c.h.b16 %v806
        %v1371 = vunpack.c.l.b16 %v807
        %v1372 = vunpack.c.h.b16 %v807
        %v1373 = vunpack.c.l.b16 %v808
        %v1374 = vunpack.c.h.b16 %v808
        %v1375 = vunpack.c.l.b16 %v809
        %v1376 = vunpack.c.h.b16 %v809
        %v1377 = vunpack.c.l.b16 %v810
        %v1378 = vunpack.c.h.b16 %v810
        %v1379 = vunpack.c.l.b16 %v811
        %v1380 = vunpack.c.h.b16 %v811
        %v1381 = vunpack.c.l.b16 %v812
        %v1382 = vunpack.c.h.b16 %v812
        %v1383 = vunpack.c.l.b16 %v813
        %v1384 = vunpack.c.h.b16 %v813
        %v1385 = vunpack.c.l.b16 %v814
        %v1386 = vunpack.c.h.b16 %v814
        %v1387 = vunpack.c.l.b16 %v815
        %v1388 = vunpack.c.h.b16 %v815
        %v1389 = vunpack.c.l.b16 %v816
        %v1390 = vunpack.c.h.b16 %v816
        %v1391 = vunpack.c.l.b16 %v817
        %v1392 = vunpack.c.h.b16 %v817
        %v1393 = vunpack.c.l.b16 %v818
        %v1394 = vunpack.c.h.b16 %v818
        %v1395 = vunpack.c.l.b16 %v819
        %v1396 = vunpack.c.h.b16 %v819
        %v1397 = vunpack.c.l.b16 %v820
        %v1398 = vunpack.c.h.b16 %v820
        %v1399 = vunpack.c.l.b16 %v821
        %v1400 = vunpack.c.h.b16 %v821
        %v1401 = vunpack.c.l.b16 %v822
        %v1402 = vunpack.c.h.b16 %v822
        %v1403 = vunpack.c.l.b16 %v823
        %v1404 = vunpack.c.h.b16 %v823
        %v1405 = vunpack.c.l.b16 %v824
        %v1406 = vunpack.c.h.b16 %v824
        %v1407 = vunpack.c.l.b16 %v825
        %v1408 = vunpack.c.h.b16 %v825
        %v1409 = vunpack.c.l.b16 %v826
        %v1410 = vunpack.c.h.b16 %v826
        %v1411 = vunpack.c.l.b16 %v827
        %v1412 = vunpack.c.h.b16 %v827
        %v1413 = vunpack.c.l.b16 %v828
        %v1414 = vunpack.c.h.b16 %v828
        %v1415 = vunpack.c.l.b16 %v829
        %v1416 = vunpack.c.h.b16 %v829
        %v1417 = vunpack.c.l.b16 %v830
        %v1418 = vunpack.c.h.b16 %v830
        %v1419 = vunpack.c.l.b16 %v831
        %v1420 = vunpack.c.h.b16 %v831
        %v1421 = vunpack.c.l.b16 %v832
        %v1422 = vunpack.c.h.b16 %v832
        %v1423 = vunpack.c.l.b16 %v833
        %v1424 = vunpack.c.h.b16 %v833
        %v1425 = vunpack.c.l.b16 %v834
        %v1426 = vunpack.c.h.b16 %v834
        %v1427 = vunpack.c.l.b16 %v835
        %v1428 = vunpack.c.h.b16 %v835
        %v1429 = vunpack.c.l.b16 %v836
        %v1430 = vunpack.c.h.b16 %v836
        %v1431 = vunpack.c.l.b16 %v837
        %v1432 = vunpack.c.h.b16 %v837
        %v1433 = vunpack.c.l.b16 %v838
        %v1434 = vunpack.c.h.b16 %v838
        %v1435 = vunpack.c.l.b16 %v839
        %v1436 = vunpack.c.h.b16 %v839
        %v1437 = vunpack.c.l.b16 %v840
        %v1438 = vunpack.c.h.b16 %v840
        %v1439 = vunpack.c.l.b16 %v841
        %v1440 = vunpack.c.h.b16 %v841
        %v1441 = vunpack.c.l.b16 %v842
        %v1442 = vunpack.c.h.b16 %v842
        %v1443 = vunpack.c.l.b16 %v843
        %v1444 = vunpack.c.h.b16 %v843
        %v1445 = vunpack.c.l.b16 %v844
        %v1446 = vunpack.c.h.b16 %v844
        %v1447 = vunpack.c.l.b16 %v845
        %v1448 = vunpack.c.h.b16 %v845
        %v1449 = vunpack.c.l.b16 %v846
        %v1450 = vunpack.c.h.b16 %v846
        %v1451 = vunpack.c.l.b16 %v847
        %v1452 = vunpack.c.h.b16 %v847
        %v1453 = vunpack.c.l.b16 %v848
        %v1454 = vunpack.c.h.b16 %v848
        %v1455 = vunpack.c.l.b16 %v849
        %v1456 = vunpack.c.h.b16 %v849
        %v1457 = vunpack.c.l.b16 %v850
        %v1458 = vunpack.c.h.b16 %v850
        %v1459 = vunpack.c.l.b16 %v851
        %v1460 = vunpack.c.h.b16 %v851
        %v1461 = vunpack.c.l.b16 %v852
        %v1462 = vunpack.c.h.b16 %v852
        %v1463 = vunpack.c.l.b16 %v853
        %v1464 = vunpack.c.h.b16 %v853
        %v1465 = vunpack.c.l.b16 %v854
        %v1466 = vunpack.c.h.b16 %v854
        %v1467 = vunpack.c.l.b16 %v855
        %v1468 = vunpack.c.h.b16 %v855
        %v1469 = vunpack.c.l.b16 %v856
        %v1470 = vunpack.c.h.b16 %v856
        %v1471 = vunpack.c.l.b16 %v857
        %v1472 = vunpack.c.h.b16 %v857
        %v1473 = vunpack.c.l.b16 %v858
        %v1474 = vunpack.c.h.b16 %v858
        %v1475 = vunpack.c.l.b16 %v859
        %v1476 = vunpack.c.h.b16 %v859
        %v1477 = vunpack.c.l.b16 %v860
        %v1478 = vunpack.c.h.b16 %v860
        %v1479 = vunpack.c.l.b16 %v861
        %v1480 = vunpack.c.h.b16 %v861
        %v1481 = vunpack.c.l.b16 %v862
        %v1482 = vunpack.c.h.b16 %v862
        %v1483 = vunpack.c.l.b16 %v863
        %v1484 = vunpack.c.h.b16 %v863
        %v1485 = vunpack.c.l.b16 %v864
        %v1486 = vunpack.c.h.b16 %v864
        %v1487 = vunpack.c.l.b16 %v865
        %v1488 = vunpack.c.h.b16 %v865
        %v1489 = vunpack.c.l.b16 %v866
        %v1490 = vunpack.c.h.b16 %v866
        %v1491 = vunpack.c.l.b16 %v867
        %v1492 = vunpack.c.h.b16 %v867
        %v1493 = vunpack.c.l.b16 %v868
        %v1494 = vunpack.c.h.b16 %v868
        %v1495 = vunpack.c.l.b16 %v869
        %v1496 = vunpack.c.h.b16 %v869
        %v1497 = vunpack.c.l.b16 %v870
        %v1498 = vunpack.c.h.b16 %v870
        %v1499 = vunpack.c.l.b16 %v871
        %v1500 = vunpack.c.h.b16 %v871
        %v1501 = vunpack.c.l.b16 %v872
        %v1502 = vunpack.c.h.b16 %v872
        %v1503 = vunpack.c.l.b16 %v873
        %v1504 = vunpack.c.h.b16 %v873
        %v1505 = vunpack.c.l.b16 %v874
        %v1506 = vunpack.c.h.b16 %v874
        %v1507 = vunpack.c.l.b16 %v875
        %v1508 = vunpack.c.h.b16 %v875
        %v1509 = vunpack.c.l.b16 %v876
        %v1510 = vunpack.c.h.b16 %v876
        %v1511 = vunpack.c.l.b16 %v877
        %v1512 = vunpack.c.h.b16 %v877
        %v1513 = vunpack.c.l.b16 %v878
        %v1514 = vunpack.c.h.b16 %v878
        %v1515 = vunpack.c.l.b16 %v879
        %v1516 = vunpack.c.h.b16 %v879
        %v1517 = vunpack.c.l.b16 %v880
        %v1518 = vunpack.c.h.b16 %v880
        %v1519 = vunpack.c.l.b16 %v881
        %v1520 = vunpack.c.h.b16 %v881
        %v1521 = vunpack.c.l.b16 %v882
        %v1522 = vunpack.c.h.b16 %v882
        %v1523 = vunpack.c.l.b16 %v883
        %v1524 = vunpack.c.h.b16 %v883
        %v1525 = vunpack.c.l.b16 %v884
        %v1526 = vunpack.c.h.b16 %v884
        %v1527 = vunpack.c.l.b16 %v885
        %v1528 = vunpack.c.h.b16 %v885
        %v1529 = vunpack.c.l.b16 %v886
        %v1530 = vunpack.c.h.b16 %v886
        %v1531 = vunpack.c.l.b16 %v887
        %v1532 = vunpack.c.h.b16 %v887
        %v1533 = vunpack.c.l.b16 %v888
        %v1534 = vunpack.c.h.b16 %v888
        %v1535 = vunpack.c.l.b16 %v889
        %v1536 = vunpack.c.h.b16 %v889
        %v1537 = vunpack.c.l.b16 %v890
        %v1538 = vunpack.c.h.b16 %v890
        %v1539 = vunpack.c.l.b16 %v891
        %v1540 = vunpack.c.h.b16 %v891
        %v1541 = vunpack.c.l.b16 %v892
        %v1542 = vunpack.c.h.b16 %v892
        %v1543 = vunpack.c.l.b16 %v893
        %v1544 = vunpack.c.h.b16 %v893
        %v1545 = vunpack.c.l.b16 %v894
        %v1546 = vunpack.c.h.b16 %v894
        %v1547 = vunpack.c.l.b16 %v895
        %v1548 = vunpack.c.h.b16 %v895
        %v1549 = vunpack.c.l.b16 %v896
        %v1550 = vunpack.c.h.b16 %v896
        %v1551 = vunpack.c.l.b16 %v897
        %v1552 = vunpack.c.h.b16 %v897
        %v1553 = vunpack.c.l.b16 %v898
        %v1554 = vunpack.c.h.b16 %v898
        %v1555 = vunpack.c.l.b16 %v899
        %v1556 = vunpack.c.h.b16 %v899
        %v1557 = vunpack.c.l.b16 %v900
        %v1558 = vunpack.c.h.b16 %v900
        %v1559 = vunpack.c.l.b16 %v901
        %v1560 = vunpack.c.h.b16 %v901
        %v1561 = vunpack.c.l.b16 %v902
        %v1562 = vunpack.c.h.b16 %v902
        %v1563 = vunpack.c.l.b16 %v903
        %v1564 = vunpack.c.h.b16 %v903
        %v1565 = vunpack.c.l.b16 %v904
        %v1566 = vunpack.c.h.b16 %v904
        %v1567 = vunpack.c.l.b16 %v905
        %v1568 = vunpack.c.h.b16 %v905
        %v1569 = vunpack.c.l.b16 %v906
        %v1570 = vunpack.c.h.b16 %v906
        %v1571 = vunpack.c.l.b16 %v907
        %v1572 = vunpack.c.h.b16 %v907
        %v1573 = vunpack.c.l.b16 %v908
        %v1574 = vunpack.c.h.b16 %v908
        %v1575 = vunpack.c.l.b16 %v909
        %v1576 = vunpack.c.h.b16 %v909
        %v1577 = vunpack.c.l.b16 %v910
        %v1578 = vunpack.c.h.b16 %v910
        %v1579 = vunpack.c.l.b16 %v911
        %v1580 = vunpack.c.h.b16 %v911
        %v1581 = vunpack.c.l.b16 %v912
        %v1582 = vunpack.c.h.b16 %v912
        %v1583 = vunpack.c.l.b16 %v913
        %v1584 = vunpack.c.h.b16 %v913
        %v1585 = vunpack.c.l.b16 %v914
        %v1586 = vunpack.c.h.b16 %v914
        %v1587 = vunpack.c.l.b16 %v915
        %v1588 = vunpack.c.h.b16 %v915
        %v1589 = vunpack.c.l.b16 %v916
        %v1590 = vunpack.c.h.b16 %v916
        %v1591 = vunpack.c.l.b16 %v917
        %v1592 = vunpack.c.h.b16 %v917
        %v1593 = vunpack.c.l.b16 %v918
        %v1594 = vunpack.c.h.b16 %v918
        %v1595 = vunpack.c.l.b16 %v919
        %v1596 = vunpack.c.h.b16 %v919
        %v1597 = vunpack.c.l.b16 %v920
        %v1598 = vunpack.c.h.b16 %v920
        %v1599 = vunpack.c.l.b16 %v921
        %v1600 = vunpack.c.h.b16 %v921
        %v1601 = vunpack.c.l.b16 %v922
        %v1602 = vunpack.c.h.b16 %v922
        %v1603 = vunpack.c.l.b16 %v923
        %v1604 = vunpack.c.h.b16 %v923
        %v1605 = vunpack.c.l.b16 %v924
        %v1606 = vunpack.c.h.b16 %v924
        %v1607 = vunpack.c.l.b16 %v925
        %v1608 = vunpack.c.h.b16 %v925
        %v1609 = vunpack.c.l.b16 %v926
        %v1610 = vunpack.c.h.b16 %v926
        %v1611 = vunpack.c.l.b16 %v927
        %v1612 = vunpack.c.h.b16 %v927
        %v1613 = vunpack.c.l.b16 %v928
        %v1614 = vunpack.c.h.b16 %v928
        %v1615 = vunpack.c.l.b16 %v929
        %v1616 = vunpack.c.h.b16 %v929
        %v1617 = vunpack.c.l.b16 %v930
        %v1618 = vunpack.c.h.b16 %v930
        %v1619 = vunpack.c.l.b16 %v931
        %v1620 = vunpack.c.h.b16 %v931
        %v1621 = vunpack.c.l.b16 %v932
        %v1622 = vunpack.c.h.b16 %v932
        %v1623 = vunpack.c.l.b16 %v933
        %v1624 = vunpack.c.h.b16 %v933
        %v1625 = vunpack.c.l.b16 %v934
        %v1626 = vunpack.c.h.b16 %v934
        %v1627 = vunpack.c.l.b16 %v935
        %v1628 = vunpack.c.h.b16 %v935
        %v1629 = vunpack.c.l.b16 %v936
        %v1630 = vunpack.c.h.b16 %v936
        %v1631 = vunpack.c.l.b16 %v937
        %v1632 = vunpack.c.h.b16 %v937
        %v1633 = vunpack.c.l.b16 %v938
        %v1634 = vunpack.c.h.b16 %v938
        %v1635 = vunpack.c.l.b16 %v939
        %v1636 = vunpack.c.h.b16 %v939
        %v1637 = vunpack.c.l.b16 %v940
        %v1638 = vunpack.c.h.b16 %v940
        %v1639 = vunpack.c.l.b16 %v941
        %v1640 = vunpack.c.h.b16 %v941
        %v1641 = vunpack.c.l.b16 %v942
        %v1642 = vunpack.c.h.b16 %v942
        %v1643 = vunpack.c.l.b16 %v943
        %v1644 = vunpack.c.h.b16 %v943
        %v1645 = vunpack.c.l.b16 %v944
        %v1646 = vunpack.c.h.b16 %v944
        %v1647 = vunpack.c.l.b16 %v945
        %v1648 = vunpack.c.h.b16 %v945
        %v1649 = vunpack.c.l.b16 %v946
        %v1650 = vunpack.c.h.b16 %v946
        %v1651 = vunpack.c.l.b16 %v947
        %v1652 = vunpack.c.h.b16 %v947
        %v1653 = vunpack.c.l.b16 %v948
        %v1654 = vunpack.c.h.b16 %v948
        %v1655 = vunpack.c.l.b16 %v949
        %v1656 = vunpack.c.h.b16 %v949
        %v1657 = vunpack.c.l.b16 %v950
        %v1658 = vunpack.c.h.b16 %v950
        %v1659 = vunpack.c.l.b16 %v951
        %v1660 = vunpack.c.h.b16 %v951
        %v1661 = vunpack.c.l.b16 %v952
        %v1662 = vunpack.c.h.b16 %v952
        %v1663 = vunpack.c.l.b16 %v953
        %v1664 = vunpack.c.h.b16 %v953
        %v1665 = vunpack.c.l.b16 %v954
        %v1666 = vunpack.c.h.b16 %v954
        %v1667 = vunpack.c.l.b16 %v955
        %v1668 = vunpack.c.h.b16 %v955
        %v1669 = vunpack.c.l.b16 %v956
        %v1670 = vunpack.c.h.b16 %v956
        %v1671 = vunpack.c.l.b16 %v957
        %v1672 = vunpack.c.h.b16 %v957
        %v1673 = vunpack.c.l.b16 %v958
        %v1674 = vunpack.c.h.b16 %v958
        %v1675 = vunpack.c.l.b16 %v959
        %v1676 = vunpack.c.h.b16 %v959
        %v1677 = vunpack.c.l.b16 %v960
        %v1678 = vunpack.c.h.b16 %v960
        %v1679 = vunpack.c.l.b16 %v961
        %v1680 = vunpack.c.h.b16 %v961
        %v1681 = vunpack.c.l.b16 %v962
        %v1682 = vunpack.c.h.b16 %v962
        %v1683 = vunpack.c.l.b16 %v963
        %v1684 = vunpack.c.h.b16 %v963
        %v1685 = vunpack.c.l.b16 %v964
        %v1686 = vunpack.c.h.b16 %v964
        %v1687 = vunpack.c.l.b16 %v965
        %v1688 = vunpack.c.h.b16 %v965
        %v1689 = vunpack.c.l.b16 %v966
        %v1690 = vunpack.c.h.b16 %v966
        %v1691 = vunpack.c.l.b16 %v967
        %v1692 = vunpack.c.h.b16 %v967
        %v1693 = vunpack.c.l.b16 %v968
        %v1694 = vunpack.c.h.b16 %v968
        %v1695 = vunpack.c.l.b16 %v969
        %v1696 = vunpack.c.h.b16 %v969
        %v1697 = vunpack.c.l.b16 %v970
        %v1698 = vunpack.c.h.b16 %v970
        %v1699 = vunpack.c.l.b16 %v971
        %v1700 = vunpack.c.h.b16 %v971
        %v1701 = vunpack.c.l.b16 %v972
        %v1702 = vunpack.c.h.b16 %v972
        %v1703 = vunpack.c.l.b16 %v973
        %v1704 = vunpack.c.h.b16 %v973
        %v1705 = vunpack.c.l.b16 %v974
        %v1706 = vunpack.c.h.b16 %v974
        %v1707 = vunpack.c.l.b16 %v975
        %v1708 = vunpack.c.h.b16 %v975
        %v1709 = vunpack.c.l.b16 %v976
        %v1710 = vunpack.c.h.b16 %v976
        %v1711 = vunpack.c.l.b16 %v977
        %v1712 = vunpack.c.h.b16 %v977
        %v1713 = vunpack.c.l.b16 %v978
        %v1714 = vunpack.c.h.b16 %v978
        %v1715 = vunpack.c.l.b16 %v979
        %v1716 = vunpack.c.h.b16 %v979
        %v1717 = vunpack.c.l.b16 %v980
        %v1718 = vunpack.c.h.b16 %v980
        %v1719 = vunpack.c.l.b16 %v981
        %v1720 = vunpack.c.h.b16 %v981
        %v1721 = vunpack.c.l.b16 %v982
        %v1722 = vunpack.c.h.b16 %v982
        %v1723 = vunpack.c.l.b16 %v983
        %v1724 = vunpack.c.h.b16 %v983
        %v1725 = vunpack.c.l.b16 %v984
        %v1726 = vunpack.c.h.b16 %v984
        %v1727 = vunpack.c.l.b16 %v985
        %v1728 = vunpack.c.h.b16 %v985
        %v1729 = vunpack.c.l.b16 %v986
        %v1730 = vunpack.c.h.b16 %v986
        %v1731 = vunpack.c.l.b16 %v987
        %v1732 = vunpack.c.h.b16 %v987
        %v1733 = vunpack.c.l.b16 %v988
        %v1734 = vunpack.c.h.b16 %v988
        %v1735 = vunpack.c.l.b16 %v989
        %v1736 = vunpack.c.h.b16 %v989
        %v1737 = vunpack.c.l.b16 %v990
        %v1738 = vunpack.c.h.b16 %v990
        %v1739 = vunpack.c.l.b16 %v991
        %v1740 = vunpack.c.h.b16 %v991
        %v1741 = vunpack.c.l.b16 %v992
        %v1742 = vunpack.c.h.b16 %v992
        %v1743 = vunpack.c.l.b16 %v993
        %v1744 = vunpack.c.h.b16 %v993
        %v1745 = vunpack.c.l.b16 %v994
        %v1746 = vunpack.c.h.b16 %v994
        %v1747 = vunpack.c.l.b16 %v995
        %v1748 = vunpack.c.h.b16 %v995
        %v1749 = vunpack.c.l.b16 %v996
        %v1750 = vunpack.c.h.b16 %v996
        %v1751 = vunpack.c.l.b16 %v997
        %v1752 = vunpack.c.h.b16 %v997
        %v1753 = vunpack.c.l.b16 %v998
        %v1754 = vunpack.c.h.b16 %v998
        %v1755 = vunpack.c.l.b16 %v999
        %v1756 = vunpack.c.h.b16 %v999
        %v1757 = vunpack.c.l.b16 %v1000
        %v1758 = vunpack.c.h.b16 %v1000
        %v1759 = vunpack.c.l.b16 %v1001
        %v1760 = vunpack.c.h.b16 %v1001
        %v1761 = vunpack.c.l.b16 %v1002
        %v1762 = vunpack.c.h.b16 %v1002
        %v1763 = vunpack.c.l.b16 %v1003
        %v1764 = vunpack.c.h.b16 %v1003
        %v1765 = vunpack.c.l.b16 %v1004
        %v1766 = vunpack.c.h.b16 %v1004
        %v1767 = vunpack.c.l.b16 %v1005
        %v1768 = vunpack.c.h.b16 %v1005
        %v1769 = vunpack.c.l.b16 %v1006
        %v1770 = vunpack.c.h.b16 %v1006
        %v1771 = vunpack.c.l.b16 %v1007
        %v1772 = vunpack.c.h.b16 %v1007
        %v1773 = vunpack.c.l.b16 %v1008
        %v1774 = vunpack.c.h.b16 %v1008
        %v1775 = vunpack.c.l.b16 %v1009
        %v1776 = vunpack.c.h.b16 %v1009
        %v1777 = vunpack.c.l.b16 %v1010
        %v1778 = vunpack.c.h.b16 %v1010
        %v1779 = vunpack.c.l.b16 %v1011
        %v1780 = vunpack.c.h.b16 %v1011
        %v1781 = vunpack.c.l.b16 %v1012
        %v1782 = vunpack.c.h.b16 %v1012
        %v1783 = vunpack.c.l.b16 %v1013
        %v1784 = vunpack.c.h.b16 %v1013
        %v1785 = vunpack.c.l.b16 %v1014
        %v1786 = vunpack.c.h.b16 %v1014
        %v1787 = vunpack.c.l.b16 %v1015
        %v1788 = vunpack.c.h.b16 %v1015
        %v1789 = vunpack.c.l.b16 %v1016
        %v1790 = vunpack.c.h.b16 %v1016
        %v1791 = vunpack.c.l.b16 %v1017
        %v1792 = vunpack.c.h.b16 %v1017
        %v1793 = vunpack.c.l.b16 %v1018
        %v1794 = vunpack.c.h.b16 %v1018
        %v1795 = vunpack.c.l.b16 %v1019
        %v1796 = vunpack.c.h.b16 %v1019
        %v1797 = vunpack.c.l.b16 %v1020
        %v1798 = vunpack.c.h.b16 %v1020
        %v1799 = vunpack.c.l.b16 %v1021
        %v1800 = vunpack.c.h.b16 %v1021
        %v1801 = vunpack.c.l.b16 %v1022
        %v1802 = vunpack.c.h.b16 %v1022
        %v1803 = vunpack.c.l.b16 %v1023
        %v1804 = vunpack.c.h.b16 %v1023
        %v1805 = vunpack.c.l.b16 %v1024
        %v1806 = vunpack.c.h.b16 %v1024
        %v1807 = vunpack.c.l.b16 %v1025
        %v1808 = vunpack.c.h.b16 %v1025
        %v1809 = vunpack.c.l.b16 %v1026
        %v1810 = vunpack.c.h.b16 %v1026
        %v1811 = vunpack.c.l.b16 %v1027
        %v1812 = vunpack.c.h.b16 %v1027
        %v1813 = vunpack.c.l.b16 %v1028
        %v1814 = vunpack.c.h.b16 %v1028
        %v1815 = vunpack.c.l.b16 %v1029
        %v1816 = vunpack.c.h.b16 %v1029
        %v1817 = vunpack.c.l.b16 %v1030
        %v1818 = vunpack.c.h.b16 %v1030
        %v1819 = vunpack.c.l.b16 %v1031
        %v1820 = vunpack.c.h.b16 %v1031
        %v1821 = vunpack.c.l.b16 %v1032
        %v1822 = vunpack.c.h.b16 %v1032
        %v1823 = vunpack.c.l.b16 %v1033
        %v1824 = vunpack.c.h.b16 %v1033
        %v1825 = vunpack.c.l.b16 %v1034
        %v1826 = vunpack.c.h.b16 %v1034
        %v1827 = vunpack.c.l.b16 %v1035
        %v1828 = vunpack.c.h.b16 %v1035
        %v1829 = vunpack.c.l.b16 %v1036
        %v1830 = vunpack.c.h.b16 %v1036
        %v1831 = vunpack.c.l.b16 %v1037
        %v1832 = vunpack.c.h.b16 %v1037
        %v1833 = vunpack.c.l.b16 %v1038
        %v1834 = vunpack.c.h.b16 %v1038
        %v1835 = vunpack.c.l.b16 %v1039
        %v1836 = vunpack.c.h.b16 %v1039
        %v1837 = vunpack.c.l.b16 %v1040
        %v1838 = vunpack.c.h.b16 %v1040
        %v1839 = vunpack.c.l.b16 %v1041
        %v1840 = vunpack.c.h.b16 %v1041
        %v1841 = vunpack.c.l.b16 %v1042
        %v1842 = vunpack.c.h.b16 %v1042
        %v1843 = vunpack.c.l.b16 %v1043
        %v1844 = vunpack.c.h.b16 %v1043
        %v1845 = vunpack.c.l.b16 %v1044
        %v1846 = vunpack.c.h.b16 %v1044
        %v1847 = vunpack.c.l.b16 %v1045
        %v1848 = vunpack.c.h.b16 %v1045
        %v1849 = vunpack.c.l.b16 %v1046
        %v1850 = vunpack.c.h.b16 %v1046
        %v1851 = vpack.c.b16 %v1355, %v1339
        %v1852 = vpack.c.b16 %v1356, %v1340
        %v1853 = vpack.c.b16 %v1357, %v1341
        %v1854 = vpack.c.b16 %v1358, %v1342
        %v1855 = vpack.c.b16 %v1359, %v1343
        %v1856 = vpack.c.b16 %v1360, %v1344
        %v1857 = vpack.c.b16 %v1361, %v1345
        %v1858 = vpack.c.b16 %v1362, %v1346
        %v1859 = vpack.c.b16 %v1363, %v1347
        %v1860 = vpack.c.b16 %v1364, %v1348
        %v1861 = vpack.c.b16 %v1365, %v1349
        %v1862 = vpack.c.b16 %v1366, %v1350
        %v1863 = vpack.c.b16 %v1367, %v1351
        %v1864 = vpack.c.b16 %v1368, %v1352
        %v1865 = vpack.c.b16 %v1369, %v1353
        %v1866 = vpack.c.b16 %v1370, %v1354
        %v1867 = vpack.c.b16 %v1387, %v1371
        %v1868 = vpack.c.b16 %v1388, %v1372
        %v1869 = vpack.c.b16 %v1389, %v1373
        %v1870 = vpack.c.b16 %v1390, %v1374
        %v1871 = vpack.c.b16 %v1391, %v1375
        %v1872 = vpack.c.b16 %v1392, %v1376
        %v1873 = vpack.c.b16 %v1393, %v1377
        %v1874 = vpack.c.b16 %v1394, %v1378
        %v1875 = vpack.c.b16 %v1395, %v1379
        %v1876 = vpack.c.b16 %v1396, %v1380
        %v1877 = vpack.c.b16 %v1397, %v1381
        %v1878 = vpack.c.b16 %v1398, %v1382
        %v1879 = vpack.c.b16 %v1399, %v1383
        %v1880 = vpack.c.b16 %v1400, %v1384
        %v1881 = vpack.c.b16 %v1401, %v1385
        %v1882 = vpack.c.b16 %v1402, %v1386
        %v1883 = vpack.c.b16 %v1419, %v1403
        %v1884 = vpack.c.b16 %v1420, %v1404
        %v1885 = vpack.c.b16 %v1421, %v1405
        %v1886 = vpack.c.b16 %v1422, %v1406
        %v1887 = vpack.c.b16 %v1423, %v1407
        %v1888 = vpack.c.b16 %v1424, %v1408
        %v1889 = vpack.c.b16 %v1425, %v1409
        %v1890 = vpack.c.b16 %v1426, %v1410
        %v1891 = vpack.c.b16 %v1427, %v1411
        %v1892 = vpack.c.b16 %v1428, %v1412
        %v1893 = vpack.c.b16 %v1429, %v1413
        %v1894 = vpack.c.b16 %v1430, %v1414
        %v1895 = vpack.c.b16 %v1431, %v1415
        %v1896 = vpack.c.b16 %v1432, %v1416
        %v1897 = vpack.c.b16 %v1433, %v1417
        %v1898 = vpack.c.b16 %v1434, %v1418
        %v1899 = vpack.c.b16 %v1451, %v1435
        %v1900 = vpack.c.b16 %v1452, %v1436
        %v1901 = vpack.c.b16 %v1453, %v1437
        %v1902 = vpack.c.b16 %v1454, %v1438
        %v1903 = vpack.c.b16 %v1455, %v1439
        %v1904 = vpack.c.b16 %v1456, %v1440
        %v1905 = vpack.c.b16 %v1457, %v1441
        %v1906 = vpack.c.b16 %v1458, %v1442
        %v1907 = vpack.c.b16 %v1459, %v1443
        %v1908 = vpack.c.b16 %v1460, %v1444
        %v1909 = vpack.c.b16 %v1461, %v1445
        %v1910 = vpack.c.b16 %v1462, %v1446
        %v1911 = vpack.c.b16 %v1463, %v1447
        %v1912 = vpack.c.b16 %v1464, %v1448
        %v1913 = vpack.c.b16 %v1465, %v1449
        %v1914 = vpack.c.b16 %v1466, %v1450
        %v1915 = vpack.c.b16 %v1483, %v1467
        %v1916 = vpack.c.b16 %v1484, %v1468
        %v1917 = vpack.c.b16 %v1485, %v1469
        %v1918 = vpack.c.b16 %v1486, %v1470
        %v1919 = vpack.c.b16 %v1487, %v1471
        %v1920 = vpack.c.b16 %v1488, %v1472
        %v1921 = vpack.c.b16 %v1489, %v1473
        %v1922 = vpack.c.b16 %v1490, %v1474
        %v1923 = vpack.c.b16 %v1491, %v1475
        %v1924 = vpack.c.b16 %v1492, %v1476
        %v1925 = vpack.c.b16 %v1493, %v1477
        %v1926 = vpack.c.b16 %v1494, %v1478
        %v1927 = vpack.c.b16 %v1495, %v1479
        %v1928 = vpack.c.b16 %v1496, %v1480
        %v1929 = vpack.c.b16 %v1497, %v1481
        %v1930 = vpack.c.b16 %v1498, %v1482
        %v1931 = vpack.c.b16 %v1515, %v1499
        %v1932 = vpack.c.b16 %v1516, %v1500
        %v1933 = vpack.c.b16 %v1517, %v1501
        %v1934 = vpack.c.b16 %v1518, %v1502
        %v1935 = vpack.c.b16 %v1519, %v1503
        %v1936 = vpack.c.b16 %v1520, %v1504
        %v1937 = vpack.c.b16 %v1521, %v1505
        %v1938 = vpack.c.b16 %v1522, %v1506
        %v1939 = vpack.c.b16 %v1523, %v1507
        %v1940 = vpack.c.b16 %v1524, %v1508
        %v1941 = vpack.c.b16 %v1525, %v1509
        %v1942 = vpack.c.b16 %v1526, %v1510
        %v1943 = vpack.c.b16 %v1527, %v1511
        %v1944 = vpack.c.b16 %v1528, %v1512
        %v1945 = vpack.c.b16 %v1529, %v1513
        %v1946 = vpack.c.b16 %v1530, %v1514
        %v1947 = vpack.c.b16 %v1547, %v1531
        %v1948 = vpack.c.b16 %v1548, %v1532
        %v1949 = vpack.c.b16 %v1549, %v1533
        %v1950 = vpack.c.b16 %v1550, %v1534
        %v1951 = vpack.c.b16 %v1551, %v1535
        %v1952 = vpack.c.b16 %v1552, %v1536
        %v1953 = vpack.c.b16 %v1553, %v1537
        %v1954 = vpack.c.b16 %v1554, %v1538
        %v1955 = vpack.c.b16 %v1555, %v1539
        %v1956 = vpack.c.b16 %v1556, %v1540
        %v1957 = vpack.c.b16 %v1557, %v1541
        %v1958 = vpack.c.b16 %v1558, %v1542
        %v1959 = vpack.c.b16 %v1559, %v1543
        %v1960 = vpack.c.b16 %v1560, %v1544
        %v1961 = vpack.c.b16 %v1561, %v1545
        %v1962 = vpack.c.b16 %v1562, %v1546
        %v1963 = vpack.c.b16 %v1579, %v1563
        %v1964 = vpack.c.b16 %v1580, %v1564
        %v1965 = vpack.c.b16 %v1581, %v1565
        %v1966 = vpack.c.b16 %v1582, %v1566
        %v1967 = vpack.c.b16 %v1583, %v1567
        %v1968 = vpack.c.b16 %v1584, %v1568
        %v1969 = vpack.c.b16 %v1585, %v1569
        %v1970 = vpack.c.b16 %v1586, %v1570
        %v1971 = vpack.c.b16 %v1587, %v1571
        %v1972 = vpack.c.b16 %v1588, %v1572
        %v1973 = vpack.c.b16 %v1589, %v1573
        %v1974 = vpack.c.b16 %v1590, %v1574
        %v1975 = vpack.c.b16 %v1591, %v1575
        %v1976 = vpack.c.b16 %v1592, %v1576
        %v1977 = vpack.c.b16 %v1593, %v1577
        %v1978 = vpack.c.b16 %v1594, %v1578
        %v1979 = vpack.c.b16 %v1611, %v1595
        %v1980 = vpack.c.b16 %v1612, %v1596
        %v1981 = vpack.c.b16 %v1613, %v1597
        %v1982 = vpack.c.b16 %v1614, %v1598
        %v1983 = vpack.c.b16 %v1615, %v1599
        %v1984 = vpack.c.b16 %v1616, %v1600
        %v1985 = vpack.c.b16 %v1617, %v1601
        %v1986 = vpack.c.b16 %v1618, %v1602
        %v1987 = vpack.c.b16 %v1619, %v1603
        %v1988 = vpack.c.b16 %v1620, %v1604
        %v1989 = vpack.c.b16 %v1621, %v1605
        %v1990 = vpack.c.b16 %v1622, %v1606
        %v1991 = vpack.c.b16 %v1623, %v1607
        %v1992 = vpack.c.b16 %v1624, %v1608
        %v1993 = vpack.c.b16 %v1625, %v1609
        %v1994 = vpack.c.b16 %v1626, %v1610
        %v1995 = vpack.c.b16 %v1643, %v1627
        %v1996 = vpack.c.b16 %v1644, %v1628
        %v1997 = vpack.c.b16 %v1645, %v1629
        %v1998 = vpack.c.b16 %v1646, %v1630
        %v1999 = vpack.c.b16 %v1647, %v1631
        %v2000 = vpack.c.b16 %v1648, %v1632
        %v2001 = vpack.c.b16 %v1649, %v1633
        %v2002 = vpack.c.b16 %v1650, %v1634
        %v2003 = vpack.c.b16 %v1651, %v1635
        %v2004 = vpack.c.b16 %v1652, %v1636
        %v2005 = vpack.c.b16 %v1653, %v1637
        %v2006 = vpack.c.b16 %v1654, %v1638
        %v2007 = vpack.c.b16 %v1655, %v1639
        %v2008 = vpack.c.b16 %v1656, %v1640
        %v2009 = vpack.c.b16 %v1657, %v1641
        %v2010 = vpack.c.b16 %v1658, %v1642
        %v2011 = vpack.c.b16 %v1675, %v1659
        %v2012 = vpack.c.b16 %v1676, %v1660
        %v2013 = vpack.c.b16 %v1677, %v1661
        %v2014 = vpack.c.b16 %v1678, %v1662
        %v2015 = vpack.c.b16 %v1679, %v1663
        %v2016 = vpack.c.b16 %v1680, %v1664
        %v2017 = vpack.c.b16 %v1681, %v1665
        %v2018 = vpack.c.b16 %v1682, %v1666
        %v2019 = vpack.c.b16 %v1683, %v1667
        %v2020 = vpack.c.b16 %v1684, %v1668
        %v2021 = vpack.c.b16 %v1685, %v1669
        %v2022 = vpack.c.b16 %v1686, %v1670
        %v2023 = vpack.c.b16 %v1687, %v1671
        %v2024 = vpack.c.b16 %v1688, %v1672
        %v2025 = vpack.c.b16 %v1689, %v1673
        %v2026 = vpack.c.b16 %v1690, %v1674
        %v2027 = vpack.c.b16 %v1707, %v1691
        %v2028 = vpack.c.b16 %v1708, %v1692
        %v2029 = vpack.c.b16 %v1709, %v1693
        %v2030 = vpack.c.b16 %v1710, %v1694
        %v2031 = vpack.c.b16 %v1711, %v1695
        %v2032 = vpack.c.b16 %v1712, %v1696
        %v2033 = vpack.c.b16 %v1713, %v1697
        %v2034 = vpack.c.b16 %v1714, %v1698
        %v2035 = vpack.c.b16 %v1715, %v1699
        %v2036 = vpack.c.b16 %v1716, %v1700
        %v2037 = vpack.c.b16 %v1717, %v1701
        %v2038 = vpack.c.b16 %v1718, %v1702
        %v2039 = vpack.c.b16 %v1719, %v1703
        %v2040 = vpack.c.b16 %v1720, %v1704
        %v2041 = vpack.c.b16 %v1721, %v1705
        %v2042 = vpack.c.b16 %v1722, %v1706
        %v2043 = vpack.c.b16 %v1739, %v1723
        %v2044 = vpack.c.b16 %v1740, %v1724
        %v2045 = vpack.c.b16 %v1741, %v1725
        %v2046 = vpack.c.b16 %v1742, %v1726
        %v2047 = vpack.c.b16 %v1743, %v1727
        %v2048 = vpack.c.b16 %v1744, %v1728
        %v2049 = vpack.c.b16 %v1745, %v1729
        %v2050 = vpack.c.b16 %v1746, %v1730
        %v2051 = vpack.c.b16 %v1747, %v1731
        %v2052 = vpack.c.b16 %v1748, %v1732
        %v2053 = vpack.c.b16 %v1749, %v1733
        %v2054 = vpack.c.b16 %v1750, %v1734
        %v2055 = vpack.c.b16 %v1751, %v1735
        %v2056 = vpack.c.b16 %v1752, %v1736
        %v2057 = vpack.c.b16 %v1753, %v1737
        %v2058 = vpack.c.b16 %v1754, %v1738
        %v2059 = vpack.c.b16 %v1771, %v1755
        %v2060 = vpack.c.b16 %v1772, %v1756
        %v2061 = vpack.c.b16 %v1773, %v1757
        %v2062 = vpack.c.b16 %v1774, %v1758
        %v2063 = vpack.c.b16 %v1775, %v1759
        %v2064 = vpack.c.b16 %v1776, %v1760
        %v2065 = vpack.c.b16 %v1777, %v1761
        %v2066 = vpack.c.b16 %v1778, %v1762
        %v2067 = vpack.c.b16 %v1779, %v1763
        %v2068 = vpack.c.b16 %v1780, %v1764
        %v2069 = vpack.c.b16 %v1781, %v1765
        %v2070 = vpack.c.b16 %v1782, %v1766
        %v2071 = vpack.c.b16 %v1783, %v1767
        %v2072 = vpack.c.b16 %v1784, %v1768
        %v2073 = vpack.c.b16 %v1785, %v1769
        %v2074 = vpack.c.b16 %v1786, %v1770
        %v2075 = vpack.c.b16 %v1803, %v1787
        %v2076 = vpack.c.b16 %v1804, %v1788
        %v2077 = vpack.c.b16 %v1805, %v1789
        %v2078 = vpack.c.b16 %v1806, %v1790
        %v2079 = vpack.c.b16 %v1807, %v1791
        %v2080 = vpack.c.b16 %v1808, %v1792
        %v2081 = vpack.c.b16 %v1809, %v1793
        %v2082 = vpack.c.b16 %v1810, %v1794
        %v2083 = vpack.c.b16 %v1811, %v1795
        %v2084 = vpack.c.b16 %v1812, %v1796
        %v2085 = vpack.c.b16 %v1813, %v1797
        %v2086 = vpack.c.b16 %v1814, %v1798
        %v2087 = vpack.c.b16 %v1815, %v1799
        %v2088 = vpack.c.b16 %v1816, %v1800
        %v2089 = vpack.c.b16 %v1817, %v1801
        %v2090 = vpack.c.b16 %v1818, %v1802
        %v2091 = vpack.c.b16 %v1835, %v1819
        %v2092 = vpack.c.b16 %v1836, %v1820
        %v2093 = vpack.c.b16 %v1837, %v1821
        %v2094 = vpack.c.b16 %v1838, %v1822
        %v2095 = vpack.c.b16 %v1839, %v1823
        %v2096 = vpack.c.b16 %v1840, %v1824
        %v2097 = vpack.c.b16 %v1841, %v1825
        %v2098 = vpack.c.b16 %v1842, %v1826
        %v2099 = vpack.c.b16 %v1843, %v1827
        %v2100 = vpack.c.b16 %v1844, %v1828
        %v2101 = vpack.c.b16 %v1845, %v1829
        %v2102 = vpack.c.b16 %v1846, %v1830
        %v2103 = vpack.c.b16 %v1847, %v1831
        %v2104 = vpack.c.b16 %v1848, %v1832
        %v2105 = vpack.c.b16 %v1849, %v1833
        %v2106 = vpack.c.b16 %v1850, %v1834
        %2363 = vmatpush.bf16.msra.mxu0 %v1963
        %2364 = vmatpush.bf16.msra.mxu0 %v1947
        %2365 = vmatpush.bf16.msra.mxu0 %v1931
        %2366 = vmatpush.bf16.msra.mxu0 %v1915
        %2367 = vmatpush.bf16.msra.mxu0 %v1899
        %2368 = vmatpush.bf16.msra.mxu0 %v1883
        %2369 = vmatpush.bf16.msra.mxu0 %v1867
        %2370 = vmatpush.bf16.msra.mxu0 %v1851
        %2371 = vmatmul.bf16.gmra.mxu0 %v789
        %v2372 = vpop.f32.mrf.mxu0
        %v2373 = vadd.f32 %v1051, %v2372
        %v2374 = vpop.f32.mrf.mxu0
        %v2375 = vadd.f32 %v1051, %v2374
        %2376 = vdwg.mxu0
        %2377 = vmatpush.bf16.msra.mxu0 %v2091
        %2378 = vmatpush.bf16.msra.mxu0 %v2075
        %2379 = vmatpush.bf16.msra.mxu0 %v2059
        %2380 = vmatpush.bf16.msra.mxu0 %v2043
        %2381 = vmatpush.bf16.msra.mxu0 %v2027
        %2382 = vmatpush.bf16.msra.mxu0 %v2011
        %2383 = vmatpush.bf16.msra.mxu0 %v1995
        %2384 = vmatpush.bf16.msra.mxu0 %v1979
        %2385 = vmatmul.bf16.gmra.mxu0 %v790
        %v2386 = vpop.f32.mrf.mxu0
        %v2387 = vadd.f32 %v2373, %v2386
        %v2388 = vpop.f32.mrf.mxu0
        %v2389 = vadd.f32 %v2375, %v2388
        %2390 = vdwg.mxu0
        %2391 = vmatpush.bf16.msra.mxu0 %v1964
        %2392 = vmatpush.bf16.msra.mxu0 %v1948
        %2393 = vmatpush.bf16.msra.mxu0 %v1932
        %2394 = vmatpush.bf16.msra.mxu0 %v1916
        %2395 = vmatpush.bf16.msra.mxu0 %v1900
        %2396 = vmatpush.bf16.msra.mxu0 %v1884
        %2397 = vmatpush.bf16.msra.mxu0 %v1868
        %2398 = vmatpush.bf16.msra.mxu0 %v1852
        %2399 = vmatmul.bf16.gmra.mxu0 %v789
        %v2400 = vpop.f32.mrf.mxu0
        %v2401 = vadd.f32 %v1052, %v2400
        %v2402 = vpop.f32.mrf.mxu0
        %v2403 = vadd.f32 %v1052, %v2402
        %2404 = vdwg.mxu0
        %2405 = vmatpush.bf16.msra.mxu0 %v2092
        %2406 = vmatpush.bf16.msra.mxu0 %v2076
        %2407 = vmatpush.bf16.msra.mxu0 %v2060
        %2408 = vmatpush.bf16.msra.mxu0 %v2044
        %2409 = vmatpush.bf16.msra.mxu0 %v2028
        %2410 = vmatpush.bf16.msra.mxu0 %v2012
        %2411 = vmatpush.bf16.msra.mxu0 %v1996
        %2412 = vmatpush.bf16.msra.mxu0 %v1980
        %2413 = vmatmul.bf16.gmra.mxu0 %v790
        %v2414 = vpop.f32.mrf.mxu0
        %v2415 = vadd.f32 %v2401, %v2414
        %v2416 = vpop.f32.mrf.mxu0
        %v2417 = vadd.f32 %v2403, %v2416
        %2418 = vdwg.mxu0
        %2419 = vmatpush.bf16.msra.mxu0 %v1965
        %2420 = vmatpush.bf16.msra.mxu0 %v1949
        %2421 = vmatpush.bf16.msra.mxu0 %v1933
        %2422 = vmatpush.bf16.msra.mxu0 %v1917
        %2423 = vmatpush.bf16.msra.mxu0 %v1901
        %2424 = vmatpush.bf16.msra.mxu0 %v1885
        %2425 = vmatpush.bf16.msra.mxu0 %v1869
        %2426 = vmatpush.bf16.msra.mxu0 %v1853
        %2427 = vmatmul.bf16.gmra.mxu0 %v789
        %v2428 = vpop.f32.mrf.mxu0
        %v2429 = vadd.f32 %v1053, %v2428
        %v2430 = vpop.f32.mrf.mxu0
        %v2431 = vadd.f32 %v1053, %v2430
        %2432 = vdwg.mxu0
        %2433 = vmatpush.bf16.msra.mxu0 %v2093
        %2434 = vmatpush.bf16.msra.mxu0 %v2077
        %2435 = vmatpush.bf16.msra.mxu0 %v2061
        %2436 = vmatpush.bf16.msra.mxu0 %v2045
        %2437 = vmatpush.bf16.msra.mxu0 %v2029
        %2438 = vmatpush.bf16.msra.mxu0 %v2013
        %2439 = vmatpush.bf16.msra.mxu0 %v1997
        %2440 = vmatpush.bf16.msra.mxu0 %v1981
        %2441 = vmatmul.bf16.gmra.mxu0 %v790
        %v2442 = vpop.f32.mrf.mxu0
        %v2443 = vadd.f32 %v2429, %v2442
        %v2444 = vpop.f32.mrf.mxu0
        %v2445 = vadd.f32 %v2431, %v2444
        %2446 = vdwg.mxu0
        %2447 = vmatpush.bf16.msra.mxu0 %v1966
        %2448 = vmatpush.bf16.msra.mxu0 %v1950
        %2449 = vmatpush.bf16.msra.mxu0 %v1934
        %2450 = vmatpush.bf16.msra.mxu0 %v1918
        %2451 = vmatpush.bf16.msra.mxu0 %v1902
        %2452 = vmatpush.bf16.msra.mxu0 %v1886
        %2453 = vmatpush.bf16.msra.mxu0 %v1870
        %2454 = vmatpush.bf16.msra.mxu0 %v1854
        %2455 = vmatmul.bf16.gmra.mxu0 %v789
        %v2456 = vpop.f32.mrf.mxu0
        %v2457 = vadd.f32 %v1054, %v2456
        %v2458 = vpop.f32.mrf.mxu0
        %v2459 = vadd.f32 %v1054, %v2458
        %2460 = vdwg.mxu0
        %2461 = vmatpush.bf16.msra.mxu0 %v2094
        %2462 = vmatpush.bf16.msra.mxu0 %v2078
        %2463 = vmatpush.bf16.msra.mxu0 %v2062
        %2464 = vmatpush.bf16.msra.mxu0 %v2046
        %2465 = vmatpush.bf16.msra.mxu0 %v2030
        %2466 = vmatpush.bf16.msra.mxu0 %v2014
        %2467 = vmatpush.bf16.msra.mxu0 %v1998
        %2468 = vmatpush.bf16.msra.mxu0 %v1982
        %2469 = vmatmul.bf16.gmra.mxu0 %v790
        %v2470 = vpop.f32.mrf.mxu0
        %v2471 = vadd.f32 %v2457, %v2470
        %v2472 = vpop.f32.mrf.mxu0
        %v2473 = vadd.f32 %v2459, %v2472
        %2474 = vdwg.mxu0
        %2475 = vmatpush.bf16.msra.mxu0 %v1967
        %2476 = vmatpush.bf16.msra.mxu0 %v1951
        %2477 = vmatpush.bf16.msra.mxu0 %v1935
        %2478 = vmatpush.bf16.msra.mxu0 %v1919
        %2479 = vmatpush.bf16.msra.mxu0 %v1903
        %2480 = vmatpush.bf16.msra.mxu0 %v1887
        %2481 = vmatpush.bf16.msra.mxu0 %v1871
        %2482 = vmatpush.bf16.msra.mxu0 %v1855
        %2483 = vmatmul.bf16.gmra.mxu0 %v789
        %v2484 = vpop.f32.mrf.mxu0
        %v2485 = vadd.f32 %v1055, %v2484
        %v2486 = vpop.f32.mrf.mxu0
        %v2487 = vadd.f32 %v1055, %v2486
        %2488 = vdwg.mxu0
        %2489 = vmatpush.bf16.msra.mxu0 %v2095
        %2490 = vmatpush.bf16.msra.mxu0 %v2079
        %2491 = vmatpush.bf16.msra.mxu0 %v2063
        %2492 = vmatpush.bf16.msra.mxu0 %v2047
        %2493 = vmatpush.bf16.msra.mxu0 %v2031
        %2494 = vmatpush.bf16.msra.mxu0 %v2015
        %2495 = vmatpush.bf16.msra.mxu0 %v1999
        %2496 = vmatpush.bf16.msra.mxu0 %v1983
        %2497 = vmatmul.bf16.gmra.mxu0 %v790
        %v2498 = vpop.f32.mrf.mxu0
        %v2499 = vadd.f32 %v2485, %v2498
        %v2500 = vpop.f32.mrf.mxu0
        %v2501 = vadd.f32 %v2487, %v2500
        %2502 = vdwg.mxu0
        %2503 = vmatpush.bf16.msra.mxu0 %v1968
        %2504 = vmatpush.bf16.msra.mxu0 %v1952
        %2505 = vmatpush.bf16.msra.mxu0 %v1936
        %2506 = vmatpush.bf16.msra.mxu0 %v1920
        %2507 = vmatpush.bf16.msra.mxu0 %v1904
        %2508 = vmatpush.bf16.msra.mxu0 %v1888
        %2509 = vmatpush.bf16.msra.mxu0 %v1872
        %2510 = vmatpush.bf16.msra.mxu0 %v1856
        %2511 = vmatmul.bf16.gmra.mxu0 %v789
        %v2512 = vpop.f32.mrf.mxu0
        %v2513 = vadd.f32 %v1056, %v2512
        %v2514 = vpop.f32.mrf.mxu0
        %v2515 = vadd.f32 %v1056, %v2514
        %2516 = vdwg.mxu0
        %2517 = vmatpush.bf16.msra.mxu0 %v2096
        %2518 = vmatpush.bf16.msra.mxu0 %v2080
        %2519 = vmatpush.bf16.msra.mxu0 %v2064
        %2520 = vmatpush.bf16.msra.mxu0 %v2048
        %2521 = vmatpush.bf16.msra.mxu0 %v2032
        %2522 = vmatpush.bf16.msra.mxu0 %v2016
        %2523 = vmatpush.bf16.msra.mxu0 %v2000
        %2524 = vmatpush.bf16.msra.mxu0 %v1984
        %2525 = vmatmul.bf16.gmra.mxu0 %v790
        %v2526 = vpop.f32.mrf.mxu0
        %v2527 = vadd.f32 %v2513, %v2526
        %v2528 = vpop.f32.mrf.mxu0
        %v2529 = vadd.f32 %v2515, %v2528
        %2530 = vdwg.mxu0
        %2531 = vmatpush.bf16.msra.mxu0 %v1969
        %2532 = vmatpush.bf16.msra.mxu0 %v1953
        %2533 = vmatpush.bf16.msra.mxu0 %v1937
        %2534 = vmatpush.bf16.msra.mxu0 %v1921
        %2535 = vmatpush.bf16.msra.mxu0 %v1905
        %2536 = vmatpush.bf16.msra.mxu0 %v1889
        %2537 = vmatpush.bf16.msra.mxu0 %v1873
        %2538 = vmatpush.bf16.msra.mxu0 %v1857
        %2539 = vmatmul.bf16.gmra.mxu0 %v789
        %v2540 = vpop.f32.mrf.mxu0
        %v2541 = vadd.f32 %v1057, %v2540
        %v2542 = vpop.f32.mrf.mxu0
        %v2543 = vadd.f32 %v1057, %v2542
        %2544 = vdwg.mxu0
        %2545 = vmatpush.bf16.msra.mxu0 %v2097
        %2546 = vmatpush.bf16.msra.mxu0 %v2081
        %2547 = vmatpush.bf16.msra.mxu0 %v2065
        %2548 = vmatpush.bf16.msra.mxu0 %v2049
        %2549 = vmatpush.bf16.msra.mxu0 %v2033
        %2550 = vmatpush.bf16.msra.mxu0 %v2017
        %2551 = vmatpush.bf16.msra.mxu0 %v2001
        %2552 = vmatpush.bf16.msra.mxu0 %v1985
        %2553 = vmatmul.bf16.gmra.mxu0 %v790
        %v2554 = vpop.f32.mrf.mxu0
        %v2555 = vadd.f32 %v2541, %v2554
        %v2556 = vpop.f32.mrf.mxu0
        %v2557 = vadd.f32 %v2543, %v2556
        %2558 = vdwg.mxu0
        %2559 = vmatpush.bf16.msra.mxu0 %v1970
        %2560 = vmatpush.bf16.msra.mxu0 %v1954
        %2561 = vmatpush.bf16.msra.mxu0 %v1938
        %2562 = vmatpush.bf16.msra.mxu0 %v1922
        %2563 = vmatpush.bf16.msra.mxu0 %v1906
        %2564 = vmatpush.bf16.msra.mxu0 %v1890
        %2565 = vmatpush.bf16.msra.mxu0 %v1874
        %2566 = vmatpush.bf16.msra.mxu0 %v1858
        %2567 = vmatmul.bf16.gmra.mxu0 %v789
        %v2568 = vpop.f32.mrf.mxu0
        %v2569 = vadd.f32 %v1058, %v2568
        %v2570 = vpop.f32.mrf.mxu0
        %v2571 = vadd.f32 %v1058, %v2570
        %2572 = vdwg.mxu0
        %2573 = vmatpush.bf16.msra.mxu0 %v2098
        %2574 = vmatpush.bf16.msra.mxu0 %v2082
        %2575 = vmatpush.bf16.msra.mxu0 %v2066
        %2576 = vmatpush.bf16.msra.mxu0 %v2050
        %2577 = vmatpush.bf16.msra.mxu0 %v2034
        %2578 = vmatpush.bf16.msra.mxu0 %v2018
        %2579 = vmatpush.bf16.msra.mxu0 %v2002
        %2580 = vmatpush.bf16.msra.mxu0 %v1986
        %2581 = vmatmul.bf16.gmra.mxu0 %v790
        %v2582 = vpop.f32.mrf.mxu0
        %v2583 = vadd.f32 %v2569, %v2582
        %v2584 = vpop.f32.mrf.mxu0
        %v2585 = vadd.f32 %v2571, %v2584
        %2586 = vdwg.mxu0
        %2587 = vmatpush.bf16.msra.mxu0 %v1971
        %2588 = vmatpush.bf16.msra.mxu0 %v1955
        %2589 = vmatpush.bf16.msra.mxu0 %v1939
        %2590 = vmatpush.bf16.msra.mxu0 %v1923
        %2591 = vmatpush.bf16.msra.mxu0 %v1907
        %2592 = vmatpush.bf16.msra.mxu0 %v1891
        %2593 = vmatpush.bf16.msra.mxu0 %v1875
        %2594 = vmatpush.bf16.msra.mxu0 %v1859
        %2595 = vmatmul.bf16.gmra.mxu0 %v789
        %v2596 = vpop.f32.mrf.mxu0
        %v2597 = vadd.f32 %v1059, %v2596
        %v2598 = vpop.f32.mrf.mxu0
        %v2599 = vadd.f32 %v1059, %v2598
        %2600 = vdwg.mxu0
        %2601 = vmatpush.bf16.msra.mxu0 %v2099
        %2602 = vmatpush.bf16.msra.mxu0 %v2083
        %2603 = vmatpush.bf16.msra.mxu0 %v2067
        %2604 = vmatpush.bf16.msra.mxu0 %v2051
        %2605 = vmatpush.bf16.msra.mxu0 %v2035
        %2606 = vmatpush.bf16.msra.mxu0 %v2019
        %2607 = vmatpush.bf16.msra.mxu0 %v2003
        %2608 = vmatpush.bf16.msra.mxu0 %v1987
        %2609 = vmatmul.bf16.gmra.mxu0 %v790
        %v2610 = vpop.f32.mrf.mxu0
        %v2611 = vadd.f32 %v2597, %v2610
        %v2612 = vpop.f32.mrf.mxu0
        %v2613 = vadd.f32 %v2599, %v2612
        %2614 = vdwg.mxu0
        %2615 = vmatpush.bf16.msra.mxu0 %v1972
        %2616 = vmatpush.bf16.msra.mxu0 %v1956
        %2617 = vmatpush.bf16.msra.mxu0 %v1940
        %2618 = vmatpush.bf16.msra.mxu0 %v1924
        %2619 = vmatpush.bf16.msra.mxu0 %v1908
        %2620 = vmatpush.bf16.msra.mxu0 %v1892
        %2621 = vmatpush.bf16.msra.mxu0 %v1876
        %2622 = vmatpush.bf16.msra.mxu0 %v1860
        %2623 = vmatmul.bf16.gmra.mxu0 %v789
        %v2624 = vpop.f32.mrf.mxu0
        %v2625 = vadd.f32 %v1060, %v2624
        %v2626 = vpop.f32.mrf.mxu0
        %v2627 = vadd.f32 %v1060, %v2626
        %2628 = vdwg.mxu0
        %2629 = vmatpush.bf16.msra.mxu0 %v2100
        %2630 = vmatpush.bf16.msra.mxu0 %v2084
        %2631 = vmatpush.bf16.msra.mxu0 %v2068
        %2632 = vmatpush.bf16.msra.mxu0 %v2052
        %2633 = vmatpush.bf16.msra.mxu0 %v2036
        %2634 = vmatpush.bf16.msra.mxu0 %v2020
        %2635 = vmatpush.bf16.msra.mxu0 %v2004
        %2636 = vmatpush.bf16.msra.mxu0 %v1988
        %2637 = vmatmul.bf16.gmra.mxu0 %v790
        %v2638 = vpop.f32.mrf.mxu0
        %v2639 = vadd.f32 %v2625, %v2638
        %v2640 = vpop.f32.mrf.mxu0
        %v2641 = vadd.f32 %v2627, %v2640
        %2642 = vdwg.mxu0
        %2643 = vmatpush.bf16.msra.mxu0 %v1973
        %2644 = vmatpush.bf16.msra.mxu0 %v1957
        %2645 = vmatpush.bf16.msra.mxu0 %v1941
        %2646 = vmatpush.bf16.msra.mxu0 %v1925
        %2647 = vmatpush.bf16.msra.mxu0 %v1909
        %2648 = vmatpush.bf16.msra.mxu0 %v1893
        %2649 = vmatpush.bf16.msra.mxu0 %v1877
        %2650 = vmatpush.bf16.msra.mxu0 %v1861
        %2651 = vmatmul.bf16.gmra.mxu0 %v789
        %v2652 = vpop.f32.mrf.mxu0
        %v2653 = vadd.f32 %v1061, %v2652
        %v2654 = vpop.f32.mrf.mxu0
        %v2655 = vadd.f32 %v1061, %v2654
        %2656 = vdwg.mxu0
        %2657 = vmatpush.bf16.msra.mxu0 %v2101
        %2658 = vmatpush.bf16.msra.mxu0 %v2085
        %2659 = vmatpush.bf16.msra.mxu0 %v2069
        %2660 = vmatpush.bf16.msra.mxu0 %v2053
        %2661 = vmatpush.bf16.msra.mxu0 %v2037
        %2662 = vmatpush.bf16.msra.mxu0 %v2021
        %2663 = vmatpush.bf16.msra.mxu0 %v2005
        %2664 = vmatpush.bf16.msra.mxu0 %v1989
        %2665 = vmatmul.bf16.gmra.mxu0 %v790
        %v2666 = vpop.f32.mrf.mxu0
        %v2667 = vadd.f32 %v2653, %v2666
        %v2668 = vpop.f32.mrf.mxu0
        %v2669 = vadd.f32 %v2655, %v2668
        %2670 = vdwg.mxu0
        %2671 = vmatpush.bf16.msra.mxu0 %v1974
        %2672 = vmatpush.bf16.msra.mxu0 %v1958
        %2673 = vmatpush.bf16.msra.mxu0 %v1942
        %2674 = vmatpush.bf16.msra.mxu0 %v1926
        %2675 = vmatpush.bf16.msra.mxu0 %v1910
        %2676 = vmatpush.bf16.msra.mxu0 %v1894
        %2677 = vmatpush.bf16.msra.mxu0 %v1878
        %2678 = vmatpush.bf16.msra.mxu0 %v1862
        %2679 = vmatmul.bf16.gmra.mxu0 %v789
        %v2680 = vpop.f32.mrf.mxu0
        %v2681 = vadd.f32 %v1062, %v2680
        %v2682 = vpop.f32.mrf.mxu0
        %v2683 = vadd.f32 %v1062, %v2682
        %2684 = vdwg.mxu0
        %2685 = vmatpush.bf16.msra.mxu0 %v2102
        %2686 = vmatpush.bf16.msra.mxu0 %v2086
        %2687 = vmatpush.bf16.msra.mxu0 %v2070
        %2688 = vmatpush.bf16.msra.mxu0 %v2054
        %2689 = vmatpush.bf16.msra.mxu0 %v2038
        %2690 = vmatpush.bf16.msra.mxu0 %v2022
        %2691 = vmatpush.bf16.msra.mxu0 %v2006
        %2692 = vmatpush.bf16.msra.mxu0 %v1990
        %2693 = vmatmul.bf16.gmra.mxu0 %v790
        %v2694 = vpop.f32.mrf.mxu0
        %v2695 = vadd.f32 %v2681, %v2694
        %v2696 = vpop.f32.mrf.mxu0
        %v2697 = vadd.f32 %v2683, %v2696
        %2698 = vdwg.mxu0
        %2699 = vmatpush.bf16.msra.mxu0 %v1975
        %2700 = vmatpush.bf16.msra.mxu0 %v1959
        %2701 = vmatpush.bf16.msra.mxu0 %v1943
        %2702 = vmatpush.bf16.msra.mxu0 %v1927
        %2703 = vmatpush.bf16.msra.mxu0 %v1911
        %2704 = vmatpush.bf16.msra.mxu0 %v1895
        %2705 = vmatpush.bf16.msra.mxu0 %v1879
        %2706 = vmatpush.bf16.msra.mxu0 %v1863
        %2707 = vmatmul.bf16.gmra.mxu0 %v789
        %v2708 = vpop.f32.mrf.mxu0
        %v2709 = vadd.f32 %v1063, %v2708
        %v2710 = vpop.f32.mrf.mxu0
        %v2711 = vadd.f32 %v1063, %v2710
        %2712 = vdwg.mxu0
        %2713 = vmatpush.bf16.msra.mxu0 %v2103
        %2714 = vmatpush.bf16.msra.mxu0 %v2087
        %2715 = vmatpush.bf16.msra.mxu0 %v2071
        %2716 = vmatpush.bf16.msra.mxu0 %v2055
        %2717 = vmatpush.bf16.msra.mxu0 %v2039
        %2718 = vmatpush.bf16.msra.mxu0 %v2023
        %2719 = vmatpush.bf16.msra.mxu0 %v2007
        %2720 = vmatpush.bf16.msra.mxu0 %v1991
        %2721 = vmatmul.bf16.gmra.mxu0 %v790
        %v2722 = vpop.f32.mrf.mxu0
        %v2723 = vadd.f32 %v2709, %v2722
        %v2724 = vpop.f32.mrf.mxu0
        %v2725 = vadd.f32 %v2711, %v2724
        %2726 = vdwg.mxu0
        %2727 = vmatpush.bf16.msra.mxu0 %v1976
        %2728 = vmatpush.bf16.msra.mxu0 %v1960
        %2729 = vmatpush.bf16.msra.mxu0 %v1944
        %2730 = vmatpush.bf16.msra.mxu0 %v1928
        %2731 = vmatpush.bf16.msra.mxu0 %v1912
        %2732 = vmatpush.bf16.msra.mxu0 %v1896
        %2733 = vmatpush.bf16.msra.mxu0 %v1880
        %2734 = vmatpush.bf16.msra.mxu0 %v1864
        %2735 = vmatmul.bf16.gmra.mxu0 %v789
        %v2736 = vpop.f32.mrf.mxu0
        %v2737 = vadd.f32 %v1064, %v2736
        %v2738 = vpop.f32.mrf.mxu0
        %v2739 = vadd.f32 %v1064, %v2738
        %2740 = vdwg.mxu0
        %2741 = vmatpush.bf16.msra.mxu0 %v2104
        %2742 = vmatpush.bf16.msra.mxu0 %v2088
        %2743 = vmatpush.bf16.msra.mxu0 %v2072
        %2744 = vmatpush.bf16.msra.mxu0 %v2056
        %2745 = vmatpush.bf16.msra.mxu0 %v2040
        %2746 = vmatpush.bf16.msra.mxu0 %v2024
        %2747 = vmatpush.bf16.msra.mxu0 %v2008
        %2748 = vmatpush.bf16.msra.mxu0 %v1992
        %2749 = vmatmul.bf16.gmra.mxu0 %v790
        %v2750 = vpop.f32.mrf.mxu0
        %v2751 = vadd.f32 %v2737, %v2750
        %v2752 = vpop.f32.mrf.mxu0
        %v2753 = vadd.f32 %v2739, %v2752
        %2754 = vdwg.mxu0
        %2755 = vmatpush.bf16.msra.mxu0 %v1977
        %2756 = vmatpush.bf16.msra.mxu0 %v1961
        %2757 = vmatpush.bf16.msra.mxu0 %v1945
        %2758 = vmatpush.bf16.msra.mxu0 %v1929
        %2759 = vmatpush.bf16.msra.mxu0 %v1913
        %2760 = vmatpush.bf16.msra.mxu0 %v1897
        %2761 = vmatpush.bf16.msra.mxu0 %v1881
        %2762 = vmatpush.bf16.msra.mxu0 %v1865
        %2763 = vmatmul.bf16.gmra.mxu0 %v789
        %v2764 = vpop.f32.mrf.mxu0
        %v2765 = vadd.f32 %v1065, %v2764
        %v2766 = vpop.f32.mrf.mxu0
        %v2767 = vadd.f32 %v1065, %v2766
        %2768 = vdwg.mxu0
        %2769 = vmatpush.bf16.msra.mxu0 %v2105
        %2770 = vmatpush.bf16.msra.mxu0 %v2089
        %2771 = vmatpush.bf16.msra.mxu0 %v2073
        %2772 = vmatpush.bf16.msra.mxu0 %v2057
        %2773 = vmatpush.bf16.msra.mxu0 %v2041
        %2774 = vmatpush.bf16.msra.mxu0 %v2025
        %2775 = vmatpush.bf16.msra.mxu0 %v2009
        %2776 = vmatpush.bf16.msra.mxu0 %v1993
        %2777 = vmatmul.bf16.gmra.mxu0 %v790
        %v2778 = vpop.f32.mrf.mxu0
        %v2779 = vadd.f32 %v2765, %v2778
        %v2780 = vpop.f32.mrf.mxu0
        %v2781 = vadd.f32 %v2767, %v2780
        %2782 = vdwg.mxu0
        %2783 = vmatpush.bf16.msra.mxu0 %v1978
        %2784 = vmatpush.bf16.msra.mxu0 %v1962
        %2785 = vmatpush.bf16.msra.mxu0 %v1946
        %2786 = vmatpush.bf16.msra.mxu0 %v1930
        %2787 = vmatpush.bf16.msra.mxu0 %v1914
        %2788 = vmatpush.bf16.msra.mxu0 %v1898
        %2789 = vmatpush.bf16.msra.mxu0 %v1882
        %2790 = vmatpush.bf16.msra.mxu0 %v1866
        %2791 = vmatmul.bf16.gmra.mxu0 %v789
        %v2792 = vpop.f32.mrf.mxu0
        %v2793 = vadd.f32 %v1066, %v2792
        %v2794 = vpop.f32.mrf.mxu0
        %v2795 = vadd.f32 %v1066, %v2794
        %2796 = vdwg.mxu0
        %2797 = vmatpush.bf16.msra.mxu0 %v2106
        %2798 = vmatpush.bf16.msra.mxu0 %v2090
        %2799 = vmatpush.bf16.msra.mxu0 %v2074
        %2800 = vmatpush.bf16.msra.mxu0 %v2058
        %2801 = vmatpush.bf16.msra.mxu0 %v2042
        %2802 = vmatpush.bf16.msra.mxu0 %v2026
        %2803 = vmatpush.bf16.msra.mxu0 %v2010
        %2804 = vmatpush.bf16.msra.mxu0 %v1994
        %2805 = vmatmul.bf16.gmra.mxu0 %v790
        %v2806 = vpop.f32.mrf.mxu0
        %v2807 = vadd.f32 %v2793, %v2806
        %v2808 = vpop.f32.mrf.mxu0
        %v2809 = vadd.f32 %v2795, %v2808
        %2810 = vdwg.mxu0
        %2811 = vst [vmem:[%s420] sm:$0xff] %v2387
        %2812 = vst [vmem:[%s420 + $0x8] sm:$0xff] %v2415
        %2813 = vst [vmem:[%s420 + $0x10] sm:$0xff] %v2443
        %2814 = vst [vmem:[%s420 + $0x18] sm:$0xff] %v2471
        %2815 = vst [vmem:[%s420 + $0x20] sm:$0xff] %v2499
        %2816 = vst [vmem:[%s420 + $0x28] sm:$0xff] %v2527
        %2817 = vst [vmem:[%s420 + $0x30] sm:$0xff] %v2555
        %2818 = vst [vmem:[%s420 + $0x38] sm:$0xff] %v2583
        %2819 = vst [vmem:[%s420 + $0x40] sm:$0xff] %v2611
        %2820 = vst [vmem:[%s420 + $0x48] sm:$0xff] %v2639
        %2821 = vst [vmem:[%s420 + $0x50] sm:$0xff] %v2667
        %2822 = vst [vmem:[%s420 + $0x58] sm:$0xff] %v2695
        %2823 = vst [vmem:[%s420 + $0x60] sm:$0xff] %v2723
        %2824 = vst [vmem:[%s420 + $0x68] sm:$0xff] %v2751
        %2825 = vst [vmem:[%s420 + $0x70] sm:$0xff] %v2779
        %2826 = vst [vmem:[%s420 + $0x78] sm:$0xff] %v2807
        %2827 = vst [vmem:[%s420 + $0x80] sm:$0xff] %v2389
        %2828 = vst [vmem:[%s420 + $0x88] sm:$0xff] %v2417
        %2829 = vst [vmem:[%s420 + $0x90] sm:$0xff] %v2445
        %2830 = vst [vmem:[%s420 + $0x98] sm:$0xff] %v2473
        %2831 = vst [vmem:[%s420 + $0xa0] sm:$0xff] %v2501
        %2832 = vst [vmem:[%s420 + $0xa8] sm:$0xff] %v2529
        %2833 = vst [vmem:[%s420 + $0xb0] sm:$0xff] %v2557
        %2834 = vst [vmem:[%s420 + $0xb8] sm:$0xff] %v2585
        %2835 = vst [vmem:[%s420 + $0xc0] sm:$0xff] %v2613
        %2836 = vst [vmem:[%s420 + $0xc8] sm:$0xff] %v2641
        %2837 = vst [vmem:[%s420 + $0xd0] sm:$0xff] %v2669
        %2838 = vst [vmem:[%s420 + $0xd8] sm:$0xff] %v2697
        %2839 = vst [vmem:[%s420 + $0xe0] sm:$0xff] %v2725
        %2840 = vst [vmem:[%s420 + $0xe8] sm:$0xff] %v2753
        %2841 = vst [vmem:[%s420 + $0xf0] sm:$0xff] %v2781
        %2842 = vst [vmem:[%s420 + $0xf8] sm:$0xff] %v2809
        %s2843 = sand.u32 %s205, 1
        %s2844 = sand.u32 %s205, 1
        %s2845 = smul.addr %s2844, 256
        %s2846 = scalar_lea.vmem [#allocation11], %s2845
        // Predicated region
        $region73: #{mlp_forward.1} parent=47 // pred_check
          %p2847 = pneg %p215
        $region74: #{mlp_forward.1} parent=47 // pred_check_branch
          %2849 = sbr.rel (%p2847) target = $region76
        $region75: #{mlp_forward.1} parent=47 // pred_region
          %s2850 = smul.u32 2, %s25
          %s2851 = smul.u32 16, %s26
          %s2852 = smul.addr %s2850, 32
          %s2853 = sadd.s32 %s2851, %s2852
          %s2854 = smul.addr %s2853, 8
          %s2855 = scalar_lea.vmem %s7, %s2854
          // Predicated region
          $region77: #{mlp_forward.1} parent=75 // pred_check
            _
          $region78: #{mlp_forward.1} parent=75 // pred_check_branch
            %2857 = sbr.rel (0) target = $region80
          $region79: #{mlp_forward.1} parent=75 // pred_region
            // Predicated region
            $region81: #{mlp_forward.1} parent=79 // pred_check
              _
            $region82: #{mlp_forward.1} parent=79 // pred_check_branch
              %2859 = sbr.rel (0) target = $region84
            $region83: #{mlp_forward.1} parent=79 // pred_region
              loop: start=0, step=1, limit=1
              $region85: #{mlp_forward.1} parent=83 // loop_pre_header
                _
              $region86: #{mlp_forward.1} parent=83 // loop_header
                %s2861 = sphi 0, %s2865
                %p2862 = scmp.ge.s32.totalorder %s2861, 1
                %s2866 = sphi %s2846, %s2846
                %s2867 = sphi %s2855, %s2855
              $region87: #{mlp_forward.1} parent=83 // loop_header_branch
                %2864 = sbr.rel (%p2862) target = $region91
              $region88: #{mlp_forward.1} parent=83 // loop_body
                %v2868 = vld [vmem:[%s2866] sm:$0xff]
                %2869 = vst [vmem:[%s2867] sm:$0xff] %v2868
                %v2870 = vld [vmem:[%s2866 + $0x8] sm:$0xff]
                %2871 = vst [vmem:[%s2867 + $0x8] sm:$0xff] %v2870
                %v2872 = vld [vmem:[%s2866 + $0x10] sm:$0xff]
                %2873 = vst [vmem:[%s2867 + $0x10] sm:$0xff] %v2872
                %v2874 = vld [vmem:[%s2866 + $0x18] sm:$0xff]
                %2875 = vst [vmem:[%s2867 + $0x18] sm:$0xff] %v2874
                %v2876 = vld [vmem:[%s2866 + $0x20] sm:$0xff]
                %2877 = vst [vmem:[%s2867 + $0x20] sm:$0xff] %v2876
                %v2878 = vld [vmem:[%s2866 + $0x28] sm:$0xff]
                %2879 = vst [vmem:[%s2867 + $0x28] sm:$0xff] %v2878
                %v2880 = vld [vmem:[%s2866 + $0x30] sm:$0xff]
                %2881 = vst [vmem:[%s2867 + $0x30] sm:$0xff] %v2880
                %v2882 = vld [vmem:[%s2866 + $0x38] sm:$0xff]
                %2883 = vst [vmem:[%s2867 + $0x38] sm:$0xff] %v2882
                %v2884 = vld [vmem:[%s2866 + $0x40] sm:$0xff]
                %2885 = vst [vmem:[%s2867 + $0x40] sm:$0xff] %v2884
                %v2886 = vld [vmem:[%s2866 + $0x48] sm:$0xff]
                %2887 = vst [vmem:[%s2867 + $0x48] sm:$0xff] %v2886
                %v2888 = vld [vmem:[%s2866 + $0x50] sm:$0xff]
                %2889 = vst [vmem:[%s2867 + $0x50] sm:$0xff] %v2888
                %v2890 = vld [vmem:[%s2866 + $0x58] sm:$0xff]
                %2891 = vst [vmem:[%s2867 + $0x58] sm:$0xff] %v2890
                %v2892 = vld [vmem:[%s2866 + $0x60] sm:$0xff]
                %2893 = vst [vmem:[%s2867 + $0x60] sm:$0xff] %v2892
                %v2894 = vld [vmem:[%s2866 + $0x68] sm:$0xff]
                %2895 = vst [vmem:[%s2867 + $0x68] sm:$0xff] %v2894
                %v2896 = vld [vmem:[%s2866 + $0x70] sm:$0xff]
                %2897 = vst [vmem:[%s2867 + $0x70] sm:$0xff] %v2896
                %v2898 = vld [vmem:[%s2866 + $0x78] sm:$0xff]
                %2899 = vst [vmem:[%s2867 + $0x78] sm:$0xff] %v2898
                %v2900 = vld [vmem:[%s2866 + $0x80] sm:$0xff]
                %2901 = vst [vmem:[%s2867 + $0x100] sm:$0xff] %v2900
                %v2902 = vld [vmem:[%s2866 + $0x88] sm:$0xff]
                %2903 = vst [vmem:[%s2867 + $0x108] sm:$0xff] %v2902
                %v2904 = vld [vmem:[%s2866 + $0x90] sm:$0xff]
                %2905 = vst [vmem:[%s2867 + $0x110] sm:$0xff] %v2904
                %v2906 = vld [vmem:[%s2866 + $0x98] sm:$0xff]
                %2907 = vst [vmem:[%s2867 + $0x118] sm:$0xff] %v2906
                %v2908 = vld [vmem:[%s2866 + $0xa0] sm:$0xff]
                %2909 = vst [vmem:[%s2867 + $0x120] sm:$0xff] %v2908
                %v2910 = vld [vmem:[%s2866 + $0xa8] sm:$0xff]
                %2911 = vst [vmem:[%s2867 + $0x128] sm:$0xff] %v2910
                %v2912 = vld [vmem:[%s2866 + $0xb0] sm:$0xff]
                %2913 = vst [vmem:[%s2867 + $0x130] sm:$0xff] %v2912
                %v2914 = vld [vmem:[%s2866 + $0xb8] sm:$0xff]
                %2915 = vst [vmem:[%s2867 + $0x138] sm:$0xff] %v2914
                %v2916 = vld [vmem:[%s2866 + $0xc0] sm:$0xff]
                %2917 = vst [vmem:[%s2867 + $0x140] sm:$0xff] %v2916
                %v2918 = vld [vmem:[%s2866 + $0xc8] sm:$0xff]
                %2919 = vst [vmem:[%s2867 + $0x148] sm:$0xff] %v2918
                %v2920 = vld [vmem:[%s2866 + $0xd0] sm:$0xff]
                %2921 = vst [vmem:[%s2867 + $0x150] sm:$0xff] %v2920
                %v2922 = vld [vmem:[%s2866 + $0xd8] sm:$0xff]
                %2923 = vst [vmem:[%s2867 + $0x158] sm:$0xff] %v2922
                %v2924 = vld [vmem:[%s2866 + $0xe0] sm:$0xff]
                %2925 = vst [vmem:[%s2867 + $0x160] sm:$0xff] %v2924
                %v2926 = vld [vmem:[%s2866 + $0xe8] sm:$0xff]
                %2927 = vst [vmem:[%s2867 + $0x168] sm:$0xff] %v2926
                %v2928 = vld [vmem:[%s2866 + $0xf0] sm:$0xff]
                %2929 = vst [vmem:[%s2867 + $0x170] sm:$0xff] %v2928
                %v2930 = vld [vmem:[%s2866 + $0xf8] sm:$0xff]
                %2931 = vst [vmem:[%s2867 + $0x178] sm:$0xff] %v2930
              $region89: #{mlp_forward.1} parent=83 // loop_footer
                %s2865 = sadd.s32 1, %s2861
              $region90: #{mlp_forward.1} parent=83 // loop_footer_branch
                %2860 = sbr.rel target = $region86
              $region91: #{mlp_forward.1} parent=83 // loop_exit
                _
            $region84: #{mlp_forward.1} parent=79 // pred_fallthru
              _
            // Predicated region
            $region92: #{mlp_forward.1} parent=79 // pred_check
              _
            $region93: #{mlp_forward.1} parent=79 // pred_check_branch
              %2933 = sbr.rel target = $region95
            $region94: #{mlp_forward.1} parent=79 // pred_region
              _
            $region95: #{mlp_forward.1} parent=79 // pred_fallthru
              _
          $region80: #{mlp_forward.1} parent=75 // pred_fallthru
            _
          %2934 = vnop
        $region76: #{mlp_forward.1} parent=47 // pred_fallthru
          _
      $region48: #{mlp_forward.1} parent=5 // pred_fallthru
        _
      %p2935 = scmp.le.s32.totalorder 2, %s16
      // Predicated region
      $region96: #{mlp_forward.1} parent=5 // pred_check
        %p2936 = pneg %p2935
      $region97: #{mlp_forward.1} parent=5 // pred_check_branch
        %2938 = sbr.rel (%p2936) target = $region99
      $region98: #{mlp_forward.1} parent=5 // pred_region
        %s2939 = ssub.s32 %s16, 2
        // Predicated region
        $region100: #{mlp_forward.1} parent=98 // pred_check
          %p2940 = pneg %p221
        $region101: #{mlp_forward.1} parent=98 // pred_check_branch
          %2942 = sbr.rel (%p2940) target = $region103
        $region102: #{mlp_forward.1} parent=98 // pred_region
          %s2943 = sand.u32 %s206, 1
          %s2944 = sand.u32 %s206, 1
          %s2945 = smul.addr %s2944, 256
          %s2946 = scalar_lea.vmem [#allocation11], %s2945
        $region103: #{mlp_forward.1} parent=98 // pred_fallthru
          _
      $region99: #{mlp_forward.1} parent=5 // pred_fallthru
        _
    $region6: #{mlp_forward.1} parent=1 // loop_footer
      %s20 = sadd.s32 1, %s16
    $region7: #{mlp_forward.1} parent=1 // loop_footer_branch
      %15 = sbr.rel target = $region3
    $region8: #{mlp_forward.1} parent=1 // loop_exit
      _
    %2947 = vsyncpa [#allocation3], 1
    %s2948 = scalar_lea.sflag [#allocation3], 1
    %2949 = vsyncpa %s2948, 1
    %2950 = vsyncpa [#allocation5], 1
    %2951 = vsyncpa [#allocation8], 1

</llo_original>
